<compile_context>
chip_gen: v5e
topology: v5e:2x2
jax: 0.10.0
libtpu: 0.0.40
codegen_flags: <defaults>
</compile_context>

<pallas_src>
import functools

import jax
import jax.numpy as jnp
import numpy as np
from jax import lax
from jax.experimental import pallas as pl
from jax.experimental.pallas import tpu as pltpu


def _erf(x):
    # Abramowitz & Stegun 7.1.26 (max abs error 1.5e-7) -- avoids lax.erf inside Mosaic.
    a1, a2, a3, a4, a5 = 0.254829592, -0.284496736, 1.421413741, -1.453152027, 1.061405429
    p = 0.3275911
    ax = jnp.abs(x)
    t = 1.0 / (1.0 + p * ax)
    poly = ((((a5 * t + a4) * t + a3) * t + a2) * t + a1) * t
    y = 1.0 - poly * jnp.exp(-ax * ax)
    return jnp.where(x >= 0.0, y, -y)


def _gelu_exact(x):
    # PyTorch F.gelu default (erf-based), to 1.5e-7.
    return 0.5 * x * (1.0 + _erf(x * 0.7071067811865476))


def transformer_block_kernel(xq_ref, xkv_ref, ln1w_ref, ln1b_ref,
                             wq_ref, wkv_ref, wo_ref, bo_ref,
                             ln2w_ref, ln2b_ref,
                             wff1_ref, bff1_ref, wff2_ref, bff2_ref,
                             o_ref,
                             k_scr, v_scr, q_scr, acc_scr,
                             *, n_heads, d_head, eps):
    """One (batch, query-tile) per grid step.  All projections, attention, LayerNorms,
    GEGLU and residuals run inside the kernel.  K/V are cached in VMEM once per batch."""
    f32 = jnp.float32
    bf16 = jnp.bfloat16
    inner = n_heads * d_head

    def layer_norm(t, w_ref, b_ref):
        mu = jnp.mean(t, axis=-1, keepdims=True)
        var = jnp.mean((t - mu) ** 2, axis=-1, keepdims=True)
        return (t - mu) * lax.rsqrt(var + eps) * w_ref[...] + b_ref[...]

    # ---- KV cache: full-seq LayerNorm + fused KV projection, ONCE per batch element ----
    # (qi axis is "arbitrary"/sequential, so the scratch stays valid for qi = 1..last.)
    @pl.when(pl.program_id(1) == 0)
    def _build_kv_cache():
        xkv = xkv_ref[0]                                                   # (N, D)  f32
        hkv = layer_norm(xkv, ln1w_ref, ln1b_ref)
        kv = jnp.dot(hkv.astype(bf16), wkv_ref[...],
                     preferred_element_type=f32)                           # (N, 2*inner)
        for h in range(n_heads):                                           # static, cheap copies
            lo = h * d_head
            k_scr[h] = kv[:, lo:lo + d_head].astype(bf16)                  # (N, d_head)
            v_scr[h] = kv[:, inner + lo:inner + lo + d_head].astype(bf16)  # (N, d_head)

    # ---- per-tile Q path: norm1 + Q projection (softmax scale pre-folded into Wq) ----
    xq = xq_ref[0]                                                         # (TQ, D) f32 residual
    hq = layer_norm(xq, ln1w_ref, ln1b_ref)
    q = jnp.dot(hq.astype(bf16), wq_ref[...], preferred_element_type=f32)  # (TQ, inner)
    for h in range(n_heads):
        lo = h * d_head
        q_scr[h] = q[:, lo:lo + d_head].astype(bf16)                       # (TQ, d_head)

    # ---- softmax attention, one head live at a time; Wo applied per head and accumulated ----
    acc_scr[...] = jnp.zeros_like(acc_scr)                                 # (TQ, D) f32

    def head_body(h, carry):
        q_h = q_scr[h]                                                     # (TQ, d_head) bf16
        k_h = k_scr[h]                                                     # (N,  d_head) bf16
        v_h = v_scr[h]                                                     # (N,  d_head) bf16
        s = lax.dot_general(q_h, k_h, (((1,), (1,)), ((), ())),
                            preferred_element_type=f32)                    # (TQ, N)
        m = jnp.max(s, axis=-1, keepdims=True)
        p = jnp.exp(s - m)                                                 # f32 exp (safe on v5e)
        denom = jnp.sum(p, axis=-1, keepdims=True)
        # approx reciprocal (EUP slot); rows sum to ~1 within bf16/2e-2 tolerance.
        p_b = (p * pl.reciprocal(denom, approx=True)).astype(bf16)
        o_h = jnp.dot(p_b, v_h, preferred_element_type=f32)                # (TQ, d_head)
        acc_scr[...] += jnp.dot(o_h.astype(bf16), wo_ref[h],
                                preferred_element_type=f32)                # (TQ, D)
        return carry

    lax.fori_loop(0, n_heads, head_body, 0)

    x1 = xq + acc_scr[...] + bo_ref[...]                                   # residual 1 (f32)

    # ---- norm2 + GEGLU feed-forward ----
    h2 = layer_norm(x1, ln2w_ref, ln2b_ref)
    ffp = jnp.dot(h2.astype(bf16), wff1_ref[...], preferred_element_type=f32) + bff1_ref[...]
    ff_inner = wff2_ref.shape[0]
    val = ffp[:, :ff_inner]
    gate = ffp[:, ff_inner:]
    y = val * _gelu_exact(gate)
    ff_out = jnp.dot(y.astype(bf16), wff2_ref[...], preferred_element_type=f32) + bff2_ref[...]

    o_ref[0] = (x1 + ff_out).astype(o_ref.dtype)                           # residual 2


def _pick_tq(n):
    """Largest supported query tile that divides N (bigger tiles -> fewer grid steps)."""
    if n <= 512:
        return n
    for t in (512, 256, 128):
        if n % t == 0:
            return t
    return n  # fall back to the full sequence as one tile


def _vmem_limit_bytes():
    """~75% of the chip's physical VMEM, capped at 100 MiB (v5e/v6e ~96 MiB, v7x ~48 MiB)."""
    cap = 64 * 1024 * 1024  # conservative fallback (v7x per-TC physical VMEM)
    try:
        cap = int(pltpu.get_tpu_info().vmem_capacity_bytes)
    except Exception:
        pass
    return min((cap * 3) // 4, 100 * 1024 * 1024)


def basic_transformer_block(x, params, n_heads, d_head):
    B, N, D = x.shape
    inner = n_heads * d_head
    ff_inner = params["wff2"].shape[1]

    TQ = _pick_tq(N)
    assert N % TQ == 0, "sequence length must be divisible by the query tile"

    f32, bf16 = jnp.float32, jnp.bfloat16
    scale = 1.0 / (d_head ** 0.5)

    # glue: parameter layout prep (transposes / reshapes / dtype casts only)
    wq_t = (params["wq"].T * scale).astype(bf16)                                  # (D, inner); scale folded
    wkv_t = jnp.concatenate([params["wk"].T, params["wv"].T], axis=1).astype(bf16)  # (D, 2*inner)
    wo3 = params["wo"].T.reshape(n_heads, d_head, D).astype(bf16)                 # (H, dh, D)
    bo = params["bo"].reshape(1, D).astype(f32)
    ln1w = params["ln1_w"].reshape(1, D).astype(f32)
    ln1b = params["ln1_b"].reshape(1, D).astype(f32)
    ln2w = params["ln2_w"].reshape(1, D).astype(f32)
    ln2b = params["ln2_b"].reshape(1, D).astype(f32)
    wff1_t = params["wff1"].T.astype(bf16)                                        # (D, 2*ff_inner)
    bff1 = params["bff1"].reshape(1, 2 * ff_inner).astype(f32)
    wff2_t = params["wff2"].T.astype(bf16)                                        # (ff_inner, D)
    bff2 = params["bff2"].reshape(1, D).astype(f32)

    kernel = functools.partial(transformer_block_kernel,
                               n_heads=n_heads, d_head=d_head, eps=1e-5)

    grid_spec = pltpu.PrefetchScalarGridSpec(
        num_scalar_prefetch=0,
        grid=(B, N // TQ),
        in_specs=[
            pl.BlockSpec((1, TQ, D), lambda b, qi: (b, qi, 0)),            # x, query tile
            pl.BlockSpec((1, N, D), lambda b, qi: (b, 0, 0)),              # x, full seq (K/V source)
            pl.BlockSpec((1, D), lambda b, qi: (0, 0)),                    # ln1 weight
            pl.BlockSpec((1, D), lambda b, qi: (0, 0)),                    # ln1 bias
            pl.BlockSpec((D, inner), lambda b, qi: (0, 0)),                # Wq^T (scale folded)
            pl.BlockSpec((D, 2 * inner), lambda b, qi: (0, 0)),            # [Wk^T | Wv^T]
            pl.BlockSpec((n_heads, d_head, D), lambda b, qi: (0, 0, 0)),   # Wout^T per head
            pl.BlockSpec((1, D), lambda b, qi: (0, 0)),                    # bout
            pl.BlockSpec((1, D), lambda b, qi: (0, 0)),                    # ln2 weight
            pl.BlockSpec((1, D), lambda b, qi: (0, 0)),                    # ln2 bias
            pl.BlockSpec((D, 2 * ff_inner), lambda b, qi: (0, 0)),         # GEGLU Wproj^T
            pl.BlockSpec((1, 2 * ff_inner), lambda b, qi: (0, 0)),         # GEGLU bias
            pl.BlockSpec((ff_inner, D), lambda b, qi: (0, 0)),             # FF Wout^T
            pl.BlockSpec((1, D), lambda b, qi: (0, 0)),                    # FF bias
        ],
        out_specs=pl.BlockSpec((1, TQ, D), lambda b, qi: (b, qi, 0)),
        scratch_shapes=[
            pltpu.VMEM((n_heads, N, d_head), jnp.bfloat16),   # K cache (persists per batch)
            pltpu.VMEM((n_heads, N, d_head), jnp.bfloat16),   # V cache (persists per batch)
            pltpu.VMEM((n_heads, TQ, d_head), jnp.bfloat16),  # per-head Q for this tile
            pltpu.VMEM((TQ, D), jnp.float32),                 # attention-output accumulator
        ],
    )

    # Advisory cost estimate so XLA schedules surrounding ops around this fused call.
    flops = (2 * B * N * D * inner                 # Q projection
             + 2 * B * N * D * 2 * inner           # fused KV projection (once per batch)
             + 4 * B * N * N * inner               # QK^T + PV
             + 2 * B * N * inner * D               # attention output projection
             + 2 * B * N * D * 2 * ff_inner        # GEGLU projection
             + 2 * B * N * ff_inner * D)           # FF output projection
    transcendentals = B * n_heads * N * N + 2 * B * N * ff_inner
    weight_bytes = 2 * (D * inner + D * 2 * inner + inner * D
                        + D * 2 * ff_inner + ff_inner * D)
    bytes_accessed = 4 * 2 * B * N * D + weight_bytes + 4 * (6 * D + 2 * ff_inner)

    return pl.pallas_call(
        kernel,
        out_shape=jax.ShapeDtypeStruct((B, N, D), jnp.float32),
        grid_spec=grid_spec,
        cost_estimate=pl.CostEstimate(flops=int(flops),
                                      transcendentals=int(transcendentals),
                                      bytes_accessed=int(bytes_accessed)),
        compiler_params=pltpu.CompilerParams(
            # qi must be sequential so the per-batch KV cache in scratch stays valid.
            dimension_semantics=("parallel", "arbitrary"),
            vmem_limit_bytes=_vmem_limit_bytes()),
    )(x.astype(f32), x.astype(f32), ln1w, ln1b, wq_t, wkv_t, wo3, bo,
      ln2w, ln2b, wff1_t, bff1, wff2_t, bff2)


def reference(x, params, n_heads, d_head, eps=1e-5):
    """Pure-JAX (f32) mirror of BasicTransformerSingleLayerBlock._forward, for verification."""
    B, N, D = x.shape
    inner = n_heads * d_head

    def ln(t, w, b):
        mu = t.mean(-1, keepdims=True)
        var = ((t - mu) ** 2).mean(-1, keepdims=True)
        return (t - mu) / jnp.sqrt(var + eps) * w + b

    h = ln(x, params["ln1_w"], params["ln1_b"])
    q = h @ params["wq"].T
    k = h @ params["wk"].T
    v = h @ params["wv"].T

    def heads(t):
        return t.reshape(B, N, n_heads, d_head).transpose(0, 2, 1, 3)

    q, k, v = map(heads, (q, k, v))
    s = jnp.einsum("bhqd,bhkd->bhqk", q, k) / jnp.sqrt(jnp.float32(d_head))
    p = jax.nn.softmax(s, axis=-1)
    o = jnp.einsum("bhqk,bhkd->bhqd", p, v)
    o = o.transpose(0, 2, 1, 3).reshape(B, N, inner)
    attn = o @ params["wo"].T + params["bo"]
    x1 = x + attn

    h2 = ln(x1, params["ln2_w"], params["ln2_b"])
    ffp = h2 @ params["wff1"].T + params["bff1"]
    ff_inner = params["wff2"].shape[1]
    val, gate = ffp[..., :ff_inner], ffp[..., ff_inner:]
    y = val * jax.nn.gelu(gate, approximate=False)
    ff = y @ params["wff2"].T + params["bff2"]
    return x1 + ff


if __name__ == "__main__":
    B, N, D = 2, 8, 32                # batch, seq, hidden (dim)
    n_heads, d_head = 4, 16           # inner_dim = 64 != dim, exercises generality
    inner = n_heads * d_head
    ff_inner = 4 * D

    key = jax.random.PRNGKey(0)
    ks = jax.random.split(key, 16)
    x = jax.random.normal(ks[0], (B, N, D), jnp.float32)

    sc = 0.1
    params = {
        "ln1_w": 1.0 + 0.1 * jax.random.normal(ks[1], (D,), jnp.float32),
        "ln1_b": 0.1 * jax.random.normal(ks[2], (D,), jnp.float32),
        "wq": sc * jax.random.normal(ks[3], (inner, D), jnp.float32),
        "wk": sc * jax.random.normal(ks[4], (inner, D), jnp.float32),
        "wv": sc * jax.random.normal(ks[5], (inner, D), jnp.float32),
        "wo": sc * jax.random.normal(ks[6], (D, inner), jnp.float32),
        "bo": sc * jax.random.normal(ks[7], (D,), jnp.float32),
        "ln2_w": 1.0 + 0.1 * jax.random.normal(ks[8], (D,), jnp.float32),
        "ln2_b": 0.1 * jax.random.normal(ks[9], (D,), jnp.float32),
        "wff1": sc * jax.random.normal(ks[10], (2 * ff_inner, D), jnp.float32),
        "bff1": sc * jax.random.normal(ks[11], (2 * ff_inner,), jnp.float32),
        "wff2": sc * jax.random.normal(ks[12], (D, ff_inner), jnp.float32),
        "bff2": sc * jax.random.normal(ks[13], (D,), jnp.float32),
    }

    out = basic_transformer_block(x, params, n_heads, d_head)
    out = jax.block_until_ready(out)

    ref = reference(x, params, n_heads, d_head)
    err = float(np.max(np.abs(np.asarray(out) - np.asarray(ref))))
    assert np.allclose(np.asarray(out), np.asarray(ref), rtol=2e-2, atol=2e-2), (
        "max abs err = %g" % err)

    print("KERNEL_OK")
</pallas_src>

<mosaic_0001>
module attributes {stable_mosaic.version = 11 : i64} {
  func.func @transformer_block_kernel(%arg0: i32, %arg1: i32, %arg2: memref<1x8x32xf32, #tpu.memory_space<vmem>>, %arg3: memref<1x8x32xf32, #tpu.memory_space<vmem>>, %arg4: memref<1x32xf32, #tpu.memory_space<vmem>>, %arg5: memref<1x32xf32, #tpu.memory_space<vmem>>, %arg6: memref<32x64xbf16, #tpu.memory_space<vmem>>, %arg7: memref<32x128xbf16, #tpu.memory_space<vmem>>, %arg8: memref<4x16x32xbf16, #tpu.memory_space<vmem>>, %arg9: memref<1x32xf32, #tpu.memory_space<vmem>>, %arg10: memref<1x32xf32, #tpu.memory_space<vmem>>, %arg11: memref<1x32xf32, #tpu.memory_space<vmem>>, %arg12: memref<32x256xbf16, #tpu.memory_space<vmem>>, %arg13: memref<1x256xf32, #tpu.memory_space<vmem>>, %arg14: memref<128x32xbf16, #tpu.memory_space<vmem>>, %arg15: memref<1x32xf32, #tpu.memory_space<vmem>>, %arg16: memref<1x8x32xf32, #tpu.memory_space<vmem>>, %arg17: memref<4x8x16xbf16, #tpu.memory_space<vmem>>, %arg18: memref<4x8x16xbf16, #tpu.memory_space<vmem>>, %arg19: memref<4x8x16xbf16, #tpu.memory_space<vmem>>, %arg20: memref<8x32xf32, #tpu.memory_space<vmem>>) attributes {dimension_semantics = [#tpu.dimension_semantics<parallel>, #tpu.dimension_semantics<arbitrary>], iteration_bounds = array<i64: 2, 1>, scalar_prefetch = 0 : i64, scratch_operands = 4 : i64, tpu.core_type = #tpu.core_type<tc>, window_params = [{transform_indices = @transform_0, window_bounds = array<i64: 1, 8, 32>}, {transform_indices = @transform_1, window_bounds = array<i64: 1, 8, 32>}, {pipeline_mode = #tpu.pipeline_mode<synchronous>, transform_indices = @transform_2, window_bounds = array<i64: 1, 32>}, {pipeline_mode = #tpu.pipeline_mode<synchronous>, transform_indices = @transform_3, window_bounds = array<i64: 1, 32>}, {pipeline_mode = #tpu.pipeline_mode<synchronous>, transform_indices = @transform_4, window_bounds = array<i64: 32, 64>}, {pipeline_mode = #tpu.pipeline_mode<synchronous>, transform_indices = @transform_5, window_bounds = array<i64: 32, 128>}, {pipeline_mode = #tpu.pipeline_mode<synchronous>, transform_indices = @transform_6, window_bounds = array<i64: 4, 16, 32>}, {pipeline_mode = #tpu.pipeline_mode<synchronous>, transform_indices = @transform_7, window_bounds = array<i64: 1, 32>}, {pipeline_mode = #tpu.pipeline_mode<synchronous>, transform_indices = @transform_8, window_bounds = array<i64: 1, 32>}, {pipeline_mode = #tpu.pipeline_mode<synchronous>, transform_indices = @transform_9, window_bounds = array<i64: 1, 32>}, {pipeline_mode = #tpu.pipeline_mode<synchronous>, transform_indices = @transform_10, window_bounds = array<i64: 32, 256>}, {pipeline_mode = #tpu.pipeline_mode<synchronous>, transform_indices = @transform_11, window_bounds = array<i64: 1, 256>}, {pipeline_mode = #tpu.pipeline_mode<synchronous>, transform_indices = @transform_12, window_bounds = array<i64: 128, 32>}, {pipeline_mode = #tpu.pipeline_mode<synchronous>, transform_indices = @transform_13, window_bounds = array<i64: 1, 32>}, {transform_indices = @transform_14, window_bounds = array<i64: 1, 8, 32>}]} {
    %c0_i32 = arith.constant 0 : i32
    %0 = arith.cmpi eq, %arg1, %c0_i32 : i32
    %1 = arith.extui %0 : i1 to i32
    %c0_i32_0 = arith.constant 0 : i32
    %2 = arith.cmpi ne, %1, %c0_i32_0 : i32
    scf.if %2 {
      %c0_69 = arith.constant 0 : index
      %c0_70 = arith.constant 0 : index
      %c0_71 = arith.constant 0 : index
      %143 = vector.load %arg3[%c0_69, %c0_70, %c0_71] : memref<1x8x32xf32, #tpu.memory_space<vmem>>, vector<1x8x32xf32>
      %144 = vector.shape_cast %143 : vector<1x8x32xf32> to vector<8x32xf32>
      %cst_72 = arith.constant dense<0.000000e+00> : vector<8xf32>
      %145 = vector.multi_reduction <add>, %144, %cst_72 [1] : vector<8x32xf32> to vector<8xf32>
      %146 = vector.shape_cast %145 : vector<8xf32> to vector<8x1xf32>
      %cst_73 = arith.constant 3.200000e+01 : f32
      %147 = vector.broadcast %cst_73 : f32 to vector<8x1xf32>
      %148 = arith.divf %146, %147 : vector<8x1xf32>
      %149 = vector.broadcast %148 : vector<8x1xf32> to vector<8x32xf32>
      %150 = arith.subf %144, %149 : vector<8x32xf32>
      %151 = arith.mulf %150, %150 : vector<8x32xf32>
      %cst_74 = arith.constant dense<0.000000e+00> : vector<8xf32>
      %152 = vector.multi_reduction <add>, %151, %cst_74 [1] : vector<8x32xf32> to vector<8xf32>
      %153 = vector.shape_cast %152 : vector<8xf32> to vector<8x1xf32>
      %cst_75 = arith.constant 3.200000e+01 : f32
      %154 = vector.broadcast %cst_75 : f32 to vector<8x1xf32>
      %155 = arith.divf %153, %154 : vector<8x1xf32>
      %156 = vector.broadcast %148 : vector<8x1xf32> to vector<8x32xf32>
      %157 = arith.subf %144, %156 : vector<8x32xf32>
      %cst_76 = arith.constant 9.99999974E-6 : f32
      %158 = vector.broadcast %cst_76 : f32 to vector<8x1xf32>
      %159 = arith.addf %155, %158 : vector<8x1xf32>
      %160 = math.rsqrt %159 : vector<8x1xf32>
      %161 = vector.broadcast %160 : vector<8x1xf32> to vector<8x32xf32>
      %162 = arith.mulf %157, %161 : vector<8x32xf32>
      %c0_77 = arith.constant 0 : index
      %c0_78 = arith.constant 0 : index
      %163 = vector.load %arg4[%c0_77, %c0_78] : memref<1x32xf32, #tpu.memory_space<vmem>>, vector<1x32xf32>
      %164 = vector.broadcast %163 : vector<1x32xf32> to vector<8x32xf32>
      %165 = arith.mulf %162, %164 : vector<8x32xf32>
      %c0_79 = arith.constant 0 : index
      %c0_80 = arith.constant 0 : index
      %166 = vector.load %arg5[%c0_79, %c0_80] : memref<1x32xf32, #tpu.memory_space<vmem>>, vector<1x32xf32>
      %167 = vector.broadcast %166 : vector<1x32xf32> to vector<8x32xf32>
      %168 = arith.addf %165, %167 : vector<8x32xf32>
      %169 = arith.truncf %168 : vector<8x32xf32> to vector<8x32xbf16>
      %c0_81 = arith.constant 0 : index
      %c0_82 = arith.constant 0 : index
      %170 = vector.load %arg7[%c0_81, %c0_82] : memref<32x128xbf16, #tpu.memory_space<vmem>>, vector<32x128xbf16>
      %cst_83 = arith.constant dense<0.000000e+00> : vector<8x128xf32>
      %171 = tpu.matmul %169, %170, %cst_83 {dimension_numbers = #tpu.dot_dimension_numbers<[1], [0], [0], [1], [0, 0, 1, 1], [], []>} : vector<8x32xbf16>, vector<32x128xbf16>, vector<8x128xf32> -> vector<8x128xf32>
      %172 = vector.extract_strided_slice %171 {offsets = [0, 0], sizes = [8, 16], strides = [1, 1]} : vector<8x128xf32> to vector<8x16xf32>
      %173 = arith.truncf %172 : vector<8x16xf32> to vector<8x16xbf16>
      %c0_84 = arith.constant 0 : index
      %c0_85 = arith.constant 0 : index
      %c0_86 = arith.constant 0 : index
      %174 = vector.load %arg17[%c0_84, %c0_85, %c0_86] : memref<4x8x16xbf16, #tpu.memory_space<vmem>>, vector<1x8x16xbf16>
      %175 = vector.shape_cast %174 : vector<1x8x16xbf16> to vector<8x16xbf16>
      %176 = vector.shape_cast %173 : vector<8x16xbf16> to vector<1x8x16xbf16>
      tpu.vector_store %arg17[%c0_84, %c0_85, %c0_86], %176 {strides = array<i32>} : memref<4x8x16xbf16, #tpu.memory_space<vmem>>, vector<1x8x16xbf16>,
      %177 = vector.extract_strided_slice %171 {offsets = [0, 64], sizes = [8, 16], strides = [1, 1]} : vector<8x128xf32> to vector<8x16xf32>
      %178 = arith.truncf %177 : vector<8x16xf32> to vector<8x16xbf16>
      %c0_87 = arith.constant 0 : index
      %c0_88 = arith.constant 0 : index
      %c0_89 = arith.constant 0 : index
      %179 = vector.load %arg18[%c0_87, %c0_88, %c0_89] : memref<4x8x16xbf16, #tpu.memory_space<vmem>>, vector<1x8x16xbf16>
      %180 = vector.shape_cast %179 : vector<1x8x16xbf16> to vector<8x16xbf16>
      %181 = vector.shape_cast %178 : vector<8x16xbf16> to vector<1x8x16xbf16>
      tpu.vector_store %arg18[%c0_87, %c0_88, %c0_89], %181 {strides = array<i32>} : memref<4x8x16xbf16, #tpu.memory_space<vmem>>, vector<1x8x16xbf16>,
      %182 = vector.extract_strided_slice %171 {offsets = [0, 16], sizes = [8, 16], strides = [1, 1]} : vector<8x128xf32> to vector<8x16xf32>
      %183 = arith.truncf %182 : vector<8x16xf32> to vector<8x16xbf16>
      %c1_90 = arith.constant 1 : index
      %c0_91 = arith.constant 0 : index
      %c0_92 = arith.constant 0 : index
      %184 = vector.load %arg17[%c1_90, %c0_91, %c0_92] : memref<4x8x16xbf16, #tpu.memory_space<vmem>>, vector<1x8x16xbf16>
      %185 = vector.shape_cast %184 : vector<1x8x16xbf16> to vector<8x16xbf16>
      %186 = vector.shape_cast %183 : vector<8x16xbf16> to vector<1x8x16xbf16>
      tpu.vector_store %arg17[%c1_90, %c0_91, %c0_92], %186 {strides = array<i32>} : memref<4x8x16xbf16, #tpu.memory_space<vmem>>, vector<1x8x16xbf16>,
      %187 = vector.extract_strided_slice %171 {offsets = [0, 80], sizes = [8, 16], strides = [1, 1]} : vector<8x128xf32> to vector<8x16xf32>
      %188 = arith.truncf %187 : vector<8x16xf32> to vector<8x16xbf16>
      %c1_93 = arith.constant 1 : index
      %c0_94 = arith.constant 0 : index
      %c0_95 = arith.constant 0 : index
      %189 = vector.load %arg18[%c1_93, %c0_94, %c0_95] : memref<4x8x16xbf16, #tpu.memory_space<vmem>>, vector<1x8x16xbf16>
      %190 = vector.shape_cast %189 : vector<1x8x16xbf16> to vector<8x16xbf16>
      %191 = vector.shape_cast %188 : vector<8x16xbf16> to vector<1x8x16xbf16>
      tpu.vector_store %arg18[%c1_93, %c0_94, %c0_95], %191 {strides = array<i32>} : memref<4x8x16xbf16, #tpu.memory_space<vmem>>, vector<1x8x16xbf16>,
      %192 = vector.extract_strided_slice %171 {offsets = [0, 32], sizes = [8, 16], strides = [1, 1]} : vector<8x128xf32> to vector<8x16xf32>
      %193 = arith.truncf %192 : vector<8x16xf32> to vector<8x16xbf16>
      %c2_96 = arith.constant 2 : index
      %c0_97 = arith.constant 0 : index
      %c0_98 = arith.constant 0 : index
      %194 = vector.load %arg17[%c2_96, %c0_97, %c0_98] : memref<4x8x16xbf16, #tpu.memory_space<vmem>>, vector<1x8x16xbf16>
      %195 = vector.shape_cast %194 : vector<1x8x16xbf16> to vector<8x16xbf16>
      %196 = vector.shape_cast %193 : vector<8x16xbf16> to vector<1x8x16xbf16>
      tpu.vector_store %arg17[%c2_96, %c0_97, %c0_98], %196 {strides = array<i32>} : memref<4x8x16xbf16, #tpu.memory_space<vmem>>, vector<1x8x16xbf16>,
      %197 = vector.extract_strided_slice %171 {offsets = [0, 96], sizes = [8, 16], strides = [1, 1]} : vector<8x128xf32> to vector<8x16xf32>
      %198 = arith.truncf %197 : vector<8x16xf32> to vector<8x16xbf16>
      %c2_99 = arith.constant 2 : index
      %c0_100 = arith.constant 0 : index
      %c0_101 = arith.constant 0 : index
      %199 = vector.load %arg18[%c2_99, %c0_100, %c0_101] : memref<4x8x16xbf16, #tpu.memory_space<vmem>>, vector<1x8x16xbf16>
      %200 = vector.shape_cast %199 : vector<1x8x16xbf16> to vector<8x16xbf16>
      %201 = vector.shape_cast %198 : vector<8x16xbf16> to vector<1x8x16xbf16>
      tpu.vector_store %arg18[%c2_99, %c0_100, %c0_101], %201 {strides = array<i32>} : memref<4x8x16xbf16, #tpu.memory_space<vmem>>, vector<1x8x16xbf16>,
      %202 = vector.extract_strided_slice %171 {offsets = [0, 48], sizes = [8, 16], strides = [1, 1]} : vector<8x128xf32> to vector<8x16xf32>
      %203 = arith.truncf %202 : vector<8x16xf32> to vector<8x16xbf16>
      %c3_102 = arith.constant 3 : index
      %c0_103 = arith.constant 0 : index
      %c0_104 = arith.constant 0 : index
      %204 = vector.load %arg17[%c3_102, %c0_103, %c0_104] : memref<4x8x16xbf16, #tpu.memory_space<vmem>>, vector<1x8x16xbf16>
      %205 = vector.shape_cast %204 : vector<1x8x16xbf16> to vector<8x16xbf16>
      %206 = vector.shape_cast %203 : vector<8x16xbf16> to vector<1x8x16xbf16>
      tpu.vector_store %arg17[%c3_102, %c0_103, %c0_104], %206 {strides = array<i32>} : memref<4x8x16xbf16, #tpu.memory_space<vmem>>, vector<1x8x16xbf16>,
      %207 = vector.extract_strided_slice %171 {offsets = [0, 112], sizes = [8, 16], strides = [1, 1]} : vector<8x128xf32> to vector<8x16xf32>
      %208 = arith.truncf %207 : vector<8x16xf32> to vector<8x16xbf16>
      %c3_105 = arith.constant 3 : index
      %c0_106 = arith.constant 0 : index
      %c0_107 = arith.constant 0 : index
      %209 = vector.load %arg18[%c3_105, %c0_106, %c0_107] : memref<4x8x16xbf16, #tpu.memory_space<vmem>>, vector<1x8x16xbf16>
      %210 = vector.shape_cast %209 : vector<1x8x16xbf16> to vector<8x16xbf16>
      %211 = vector.shape_cast %208 : vector<8x16xbf16> to vector<1x8x16xbf16>
      tpu.vector_store %arg18[%c3_105, %c0_106, %c0_107], %211 {strides = array<i32>} : memref<4x8x16xbf16, #tpu.memory_space<vmem>>, vector<1x8x16xbf16>,
    } else {
    }
    %c0 = arith.constant 0 : index
    %c0_1 = arith.constant 0 : index
    %c0_2 = arith.constant 0 : index
    %3 = vector.load %arg2[%c0, %c0_1, %c0_2] : memref<1x8x32xf32, #tpu.memory_space<vmem>>, vector<1x8x32xf32>
    %4 = vector.shape_cast %3 : vector<1x8x32xf32> to vector<8x32xf32>
    %cst = arith.constant dense<0.000000e+00> : vector<8xf32>
    %5 = vector.multi_reduction <add>, %4, %cst [1] : vector<8x32xf32> to vector<8xf32>
    %6 = vector.shape_cast %5 : vector<8xf32> to vector<8x1xf32>
    %cst_3 = arith.constant 3.200000e+01 : f32
    %7 = vector.broadcast %cst_3 : f32 to vector<8x1xf32>
    %8 = arith.divf %6, %7 : vector<8x1xf32>
    %9 = vector.broadcast %8 : vector<8x1xf32> to vector<8x32xf32>
    %10 = arith.subf %4, %9 : vector<8x32xf32>
    %11 = arith.mulf %10, %10 : vector<8x32xf32>
    %cst_4 = arith.constant dense<0.000000e+00> : vector<8xf32>
    %12 = vector.multi_reduction <add>, %11, %cst_4 [1] : vector<8x32xf32> to vector<8xf32>
    %13 = vector.shape_cast %12 : vector<8xf32> to vector<8x1xf32>
    %cst_5 = arith.constant 3.200000e+01 : f32
    %14 = vector.broadcast %cst_5 : f32 to vector<8x1xf32>
    %15 = arith.divf %13, %14 : vector<8x1xf32>
    %16 = vector.broadcast %8 : vector<8x1xf32> to vector<8x32xf32>
    %17 = arith.subf %4, %16 : vector<8x32xf32>
    %cst_6 = arith.constant 9.99999974E-6 : f32
    %18 = vector.broadcast %cst_6 : f32 to vector<8x1xf32>
    %19 = arith.addf %15, %18 : vector<8x1xf32>
    %20 = math.rsqrt %19 : vector<8x1xf32>
    %21 = vector.broadcast %20 : vector<8x1xf32> to vector<8x32xf32>
    %22 = arith.mulf %17, %21 : vector<8x32xf32>
    %c0_7 = arith.constant 0 : index
    %c0_8 = arith.constant 0 : index
    %23 = vector.load %arg4[%c0_7, %c0_8] : memref<1x32xf32, #tpu.memory_space<vmem>>, vector<1x32xf32>
    %24 = vector.broadcast %23 : vector<1x32xf32> to vector<8x32xf32>
    %25 = arith.mulf %22, %24 : vector<8x32xf32>
    %c0_9 = arith.constant 0 : index
    %c0_10 = arith.constant 0 : index
    %26 = vector.load %arg5[%c0_9, %c0_10] : memref<1x32xf32, #tpu.memory_space<vmem>>, vector<1x32xf32>
    %27 = vector.broadcast %26 : vector<1x32xf32> to vector<8x32xf32>
    %28 = arith.addf %25, %27 : vector<8x32xf32>
    %29 = arith.truncf %28 : vector<8x32xf32> to vector<8x32xbf16>
    %c0_11 = arith.constant 0 : index
    %c0_12 = arith.constant 0 : index
    %30 = vector.load %arg6[%c0_11, %c0_12] : memref<32x64xbf16, #tpu.memory_space<vmem>>, vector<32x64xbf16>
    %cst_13 = arith.constant dense<0.000000e+00> : vector<8x64xf32>
    %31 = tpu.matmul %29, %30, %cst_13 {dimension_numbers = #tpu.dot_dimension_numbers<[1], [0], [0], [1], [0, 0, 1, 1], [], []>} : vector<8x32xbf16>, vector<32x64xbf16>, vector<8x64xf32> -> vector<8x64xf32>
    %32 = vector.extract_strided_slice %31 {offsets = [0, 0], sizes = [8, 16], strides = [1, 1]} : vector<8x64xf32> to vector<8x16xf32>
    %33 = arith.truncf %32 : vector<8x16xf32> to vector<8x16xbf16>
    %c0_14 = arith.constant 0 : index
    %c0_15 = arith.constant 0 : index
    %c0_16 = arith.constant 0 : index
    %34 = vector.load %arg19[%c0_14, %c0_15, %c0_16] : memref<4x8x16xbf16, #tpu.memory_space<vmem>>, vector<1x8x16xbf16>
    %35 = vector.shape_cast %34 : vector<1x8x16xbf16> to vector<8x16xbf16>
    %36 = vector.shape_cast %33 : vector<8x16xbf16> to vector<1x8x16xbf16>
    tpu.vector_store %arg19[%c0_14, %c0_15, %c0_16], %36 {strides = array<i32>} : memref<4x8x16xbf16, #tpu.memory_space<vmem>>, vector<1x8x16xbf16>,
    %37 = vector.extract_strided_slice %31 {offsets = [0, 16], sizes = [8, 16], strides = [1, 1]} : vector<8x64xf32> to vector<8x16xf32>
    %38 = arith.truncf %37 : vector<8x16xf32> to vector<8x16xbf16>
    %c1 = arith.constant 1 : index
    %c0_17 = arith.constant 0 : index
    %c0_18 = arith.constant 0 : index
    %39 = vector.load %arg19[%c1, %c0_17, %c0_18] : memref<4x8x16xbf16, #tpu.memory_space<vmem>>, vector<1x8x16xbf16>
    %40 = vector.shape_cast %39 : vector<1x8x16xbf16> to vector<8x16xbf16>
    %41 = vector.shape_cast %38 : vector<8x16xbf16> to vector<1x8x16xbf16>
    tpu.vector_store %arg19[%c1, %c0_17, %c0_18], %41 {strides = array<i32>} : memref<4x8x16xbf16, #tpu.memory_space<vmem>>, vector<1x8x16xbf16>,
    %42 = vector.extract_strided_slice %31 {offsets = [0, 32], sizes = [8, 16], strides = [1, 1]} : vector<8x64xf32> to vector<8x16xf32>
    %43 = arith.truncf %42 : vector<8x16xf32> to vector<8x16xbf16>
    %c2 = arith.constant 2 : index
    %c0_19 = arith.constant 0 : index
    %c0_20 = arith.constant 0 : index
    %44 = vector.load %arg19[%c2, %c0_19, %c0_20] : memref<4x8x16xbf16, #tpu.memory_space<vmem>>, vector<1x8x16xbf16>
    %45 = vector.shape_cast %44 : vector<1x8x16xbf16> to vector<8x16xbf16>
    %46 = vector.shape_cast %43 : vector<8x16xbf16> to vector<1x8x16xbf16>
    tpu.vector_store %arg19[%c2, %c0_19, %c0_20], %46 {strides = array<i32>} : memref<4x8x16xbf16, #tpu.memory_space<vmem>>, vector<1x8x16xbf16>,
    %47 = vector.extract_strided_slice %31 {offsets = [0, 48], sizes = [8, 16], strides = [1, 1]} : vector<8x64xf32> to vector<8x16xf32>
    %48 = arith.truncf %47 : vector<8x16xf32> to vector<8x16xbf16>
    %c3 = arith.constant 3 : index
    %c0_21 = arith.constant 0 : index
    %c0_22 = arith.constant 0 : index
    %49 = vector.load %arg19[%c3, %c0_21, %c0_22] : memref<4x8x16xbf16, #tpu.memory_space<vmem>>, vector<1x8x16xbf16>
    %50 = vector.shape_cast %49 : vector<1x8x16xbf16> to vector<8x16xbf16>
    %51 = vector.shape_cast %48 : vector<8x16xbf16> to vector<1x8x16xbf16>
    tpu.vector_store %arg19[%c3, %c0_21, %c0_22], %51 {strides = array<i32>} : memref<4x8x16xbf16, #tpu.memory_space<vmem>>, vector<1x8x16xbf16>,
    %cst_23 = arith.constant 0.000000e+00 : f32
    %52 = vector.broadcast %cst_23 : f32 to vector<8x32xf32>
    %c0_24 = arith.constant 0 : index
    %c0_25 = arith.constant 0 : index
    %53 = vector.load %arg20[%c0_24, %c0_25] : memref<8x32xf32, #tpu.memory_space<vmem>>, vector<8x32xf32>
    tpu.vector_store %arg20[%c0_24, %c0_25], %52 {strides = array<i32>} : memref<8x32xf32, #tpu.memory_space<vmem>>, vector<8x32xf32>,
    %c0_i32_26 = arith.constant 0 : i32
    %c4_i32 = arith.constant 4 : i32
    %54 = arith.addi %c0_i32_26, %c4_i32 : i32
    %c1_i32 = arith.constant 1 : i32
    scf.for %arg21 = %c0_i32_26 to %54 step %c1_i32  : i32 {
      %143 = arith.index_cast %arg21 : i32 to index
      %c0_69 = arith.constant 0 : index
      %c0_70 = arith.constant 0 : index
      %144 = vector.load %arg19[%143, %c0_69, %c0_70] : memref<4x8x16xbf16, #tpu.memory_space<vmem>>, vector<1x8x16xbf16>
      %145 = vector.shape_cast %144 : vector<1x8x16xbf16> to vector<8x16xbf16>
      %146 = arith.index_cast %arg21 : i32 to index
      %c0_71 = arith.constant 0 : index
      %c0_72 = arith.constant 0 : index
      %147 = vector.load %arg17[%146, %c0_71, %c0_72] : memref<4x8x16xbf16, #tpu.memory_space<vmem>>, vector<1x8x16xbf16>
      %148 = vector.shape_cast %147 : vector<1x8x16xbf16> to vector<8x16xbf16>
      %149 = arith.index_cast %arg21 : i32 to index
      %c0_73 = arith.constant 0 : index
      %c0_74 = arith.constant 0 : index
      %150 = vector.load %arg18[%149, %c0_73, %c0_74] : memref<4x8x16xbf16, #tpu.memory_space<vmem>>, vector<1x8x16xbf16>
      %151 = vector.shape_cast %150 : vector<1x8x16xbf16> to vector<8x16xbf16>
      %cst_75 = arith.constant dense<0.000000e+00> : vector<8x8xf32>
      %152 = tpu.matmul %145, %148, %cst_75 {dimension_numbers = #tpu.dot_dimension_numbers<[1], [1], [0], [0], [0, 0, 1, 0], [], []>} : vector<8x16xbf16>, vector<8x16xbf16>, vector<8x8xf32> -> vector<8x8xf32>
      %cst_76 = arith.constant dense<0xFF800000> : vector<8xf32>
      %153 = vector.multi_reduction <maximumf>, %152, %cst_76 [1] : vector<8x8xf32> to vector<8xf32>
      %154 = vector.shape_cast %153 : vector<8xf32> to vector<8x1xf32>
      %155 = vector.broadcast %154 : vector<8x1xf32> to vector<8x8xf32>
      %156 = arith.subf %152, %155 : vector<8x8xf32>
      %157 = math.exp %156 : vector<8x8xf32>
      %cst_77 = arith.constant dense<0.000000e+00> : vector<8xf32>
      %158 = vector.multi_reduction <add>, %157, %cst_77 [1] : vector<8x8xf32> to vector<8xf32>
      %159 = vector.shape_cast %158 : vector<8xf32> to vector<8x1xf32>
      %160 = tpu.reciprocal %159 {approx = true} : vector<8x1xf32> -> vector<8x1xf32>
      %161 = vector.broadcast %160 : vector<8x1xf32> to vector<8x8xf32>
      %162 = arith.mulf %157, %161 : vector<8x8xf32>
      %163 = arith.truncf %162 : vector<8x8xf32> to vector<8x8xbf16>
      %cst_78 = arith.constant dense<0.000000e+00> : vector<8x16xf32>
      %164 = tpu.matmul %163, %151, %cst_78 {dimension_numbers = #tpu.dot_dimension_numbers<[1], [0], [0], [1], [0, 0, 1, 1], [], []>} : vector<8x8xbf16>, vector<8x16xbf16>, vector<8x16xf32> -> vector<8x16xf32>
      %c0_79 = arith.constant 0 : index
      %c0_80 = arith.constant 0 : index
      %165 = vector.load %arg20[%c0_79, %c0_80] : memref<8x32xf32, #tpu.memory_space<vmem>>, vector<8x32xf32>
      %166 = arith.truncf %164 : vector<8x16xf32> to vector<8x16xbf16>
      %167 = arith.index_cast %arg21 : i32 to index
      %c0_81 = arith.constant 0 : index
      %c0_82 = arith.constant 0 : index
      %168 = vector.load %arg8[%167, %c0_81, %c0_82] : memref<4x16x32xbf16, #tpu.memory_space<vmem>>, vector<1x16x32xbf16>
      %169 = vector.shape_cast %168 : vector<1x16x32xbf16> to vector<16x32xbf16>
      %cst_83 = arith.constant dense<0.000000e+00> : vector<8x32xf32>
      %170 = tpu.matmul %166, %169, %cst_83 {dimension_numbers = #tpu.dot_dimension_numbers<[1], [0], [0], [1], [0, 0, 1, 1], [], []>} : vector<8x16xbf16>, vector<16x32xbf16>, vector<8x32xf32> -> vector<8x32xf32>
      %171 = arith.addf %165, %170 : vector<8x32xf32>
      %c0_84 = arith.constant 0 : index
      %c0_85 = arith.constant 0 : index
      %172 = vector.load %arg20[%c0_84, %c0_85] : memref<8x32xf32, #tpu.memory_space<vmem>>, vector<8x32xf32>
      tpu.vector_store %arg20[%c0_84, %c0_85], %171 {strides = array<i32>} : memref<8x32xf32, #tpu.memory_space<vmem>>, vector<8x32xf32>,
    }
    %c4_i32_27 = arith.constant 4 : i32
    %c0_28 = arith.constant 0 : index
    %c0_29 = arith.constant 0 : index
    %55 = vector.load %arg20[%c0_28, %c0_29] : memref<8x32xf32, #tpu.memory_space<vmem>>, vector<8x32xf32>
    %56 = arith.addf %4, %55 : vector<8x32xf32>
    %c0_30 = arith.constant 0 : index
    %c0_31 = arith.constant 0 : index
    %57 = vector.load %arg9[%c0_30, %c0_31] : memref<1x32xf32, #tpu.memory_space<vmem>>, vector<1x32xf32>
    %58 = vector.broadcast %57 : vector<1x32xf32> to vector<8x32xf32>
    %59 = arith.addf %56, %58 : vector<8x32xf32>
    %cst_32 = arith.constant dense<0.000000e+00> : vector<8xf32>
    %60 = vector.multi_reduction <add>, %59, %cst_32 [1] : vector<8x32xf32> to vector<8xf32>
    %61 = vector.shape_cast %60 : vector<8xf32> to vector<8x1xf32>
    %cst_33 = arith.constant 3.200000e+01 : f32
    %62 = vector.broadcast %cst_33 : f32 to vector<8x1xf32>
    %63 = arith.divf %61, %62 : vector<8x1xf32>
    %64 = vector.broadcast %63 : vector<8x1xf32> to vector<8x32xf32>
    %65 = arith.subf %59, %64 : vector<8x32xf32>
    %66 = arith.mulf %65, %65 : vector<8x32xf32>
    %cst_34 = arith.constant dense<0.000000e+00> : vector<8xf32>
    %67 = vector.multi_reduction <add>, %66, %cst_34 [1] : vector<8x32xf32> to vector<8xf32>
    %68 = vector.shape_cast %67 : vector<8xf32> to vector<8x1xf32>
    %cst_35 = arith.constant 3.200000e+01 : f32
    %69 = vector.broadcast %cst_35 : f32 to vector<8x1xf32>
    %70 = arith.divf %68, %69 : vector<8x1xf32>
    %71 = vector.broadcast %63 : vector<8x1xf32> to vector<8x32xf32>
    %72 = arith.subf %59, %71 : vector<8x32xf32>
    %cst_36 = arith.constant 9.99999974E-6 : f32
    %73 = vector.broadcast %cst_36 : f32 to vector<8x1xf32>
    %74 = arith.addf %70, %73 : vector<8x1xf32>
    %75 = math.rsqrt %74 : vector<8x1xf32>
    %76 = vector.broadcast %75 : vector<8x1xf32> to vector<8x32xf32>
    %77 = arith.mulf %72, %76 : vector<8x32xf32>
    %c0_37 = arith.constant 0 : index
    %c0_38 = arith.constant 0 : index
    %78 = vector.load %arg10[%c0_37, %c0_38] : memref<1x32xf32, #tpu.memory_space<vmem>>, vector<1x32xf32>
    %79 = vector.broadcast %78 : vector<1x32xf32> to vector<8x32xf32>
    %80 = arith.mulf %77, %79 : vector<8x32xf32>
    %c0_39 = arith.constant 0 : index
    %c0_40 = arith.constant 0 : index
    %81 = vector.load %arg11[%c0_39, %c0_40] : memref<1x32xf32, #tpu.memory_space<vmem>>, vector<1x32xf32>
    %82 = vector.broadcast %81 : vector<1x32xf32> to vector<8x32xf32>
    %83 = arith.addf %80, %82 : vector<8x32xf32>
    %84 = arith.truncf %83 : vector<8x32xf32> to vector<8x32xbf16>
    %c0_41 = arith.constant 0 : index
    %c0_42 = arith.constant 0 : index
    %85 = vector.load %arg12[%c0_41, %c0_42] : memref<32x256xbf16, #tpu.memory_space<vmem>>, vector<32x256xbf16>
    %cst_43 = arith.constant dense<0.000000e+00> : vector<8x256xf32>
    %86 = tpu.matmul %84, %85, %cst_43 {dimension_numbers = #tpu.dot_dimension_numbers<[1], [0], [0], [1], [0, 0, 1, 1], [], []>} : vector<8x32xbf16>, vector<32x256xbf16>, vector<8x256xf32> -> vector<8x256xf32>
    %c0_44 = arith.constant 0 : index
    %c0_45 = arith.constant 0 : index
    %87 = vector.load %arg13[%c0_44, %c0_45] : memref<1x256xf32, #tpu.memory_space<vmem>>, vector<1x256xf32>
    %88 = vector.broadcast %87 : vector<1x256xf32> to vector<8x256xf32>
    %89 = arith.addf %86, %88 : vector<8x256xf32>
    %90 = vector.extract_strided_slice %89 {offsets = [0, 0], sizes = [8, 128], strides = [1, 1]} : vector<8x256xf32> to vector<8x128xf32>
    %91 = vector.extract_strided_slice %89 {offsets = [0, 128], sizes = [8, 128], strides = [1, 1]} : vector<8x256xf32> to vector<8x128xf32>
    %cst_46 = arith.constant 5.000000e-01 : f32
    %92 = vector.broadcast %cst_46 : f32 to vector<8x128xf32>
    %93 = arith.mulf %92, %91 : vector<8x128xf32>
    %cst_47 = arith.constant 0.707106769 : f32
    %94 = vector.broadcast %cst_47 : f32 to vector<8x128xf32>
    %95 = arith.mulf %91, %94 : vector<8x128xf32>
    %96 = math.absf %95 : vector<8x128xf32>
    %cst_48 = arith.constant 0.327591091 : f32
    %97 = vector.broadcast %cst_48 : f32 to vector<8x128xf32>
    %98 = arith.mulf %97, %96 : vector<8x128xf32>
    %cst_49 = arith.constant 1.000000e+00 : f32
    %99 = vector.broadcast %cst_49 : f32 to vector<8x128xf32>
    %100 = arith.addf %99, %98 : vector<8x128xf32>
    %cst_50 = arith.constant 1.000000e+00 : f32
    %101 = vector.broadcast %cst_50 : f32 to vector<8x128xf32>
    %102 = arith.divf %101, %100 : vector<8x128xf32>
    %cst_51 = arith.constant 1.06140542 : f32
    %103 = vector.broadcast %cst_51 : f32 to vector<8x128xf32>
    %104 = arith.mulf %103, %102 : vector<8x128xf32>
    %cst_52 = arith.constant -1.45315206 : f32
    %105 = vector.broadcast %cst_52 : f32 to vector<8x128xf32>
    %106 = arith.addf %104, %105 : vector<8x128xf32>
    %107 = arith.mulf %106, %102 : vector<8x128xf32>
    %cst_53 = arith.constant 1.42141378 : f32
    %108 = vector.broadcast %cst_53 : f32 to vector<8x128xf32>
    %109 = arith.addf %107, %108 : vector<8x128xf32>
    %110 = arith.mulf %109, %102 : vector<8x128xf32>
    %cst_54 = arith.constant -0.284496725 : f32
    %111 = vector.broadcast %cst_54 : f32 to vector<8x128xf32>
    %112 = arith.addf %110, %111 : vector<8x128xf32>
    %113 = arith.mulf %112, %102 : vector<8x128xf32>
    %cst_55 = arith.constant 0.254829586 : f32
    %114 = vector.broadcast %cst_55 : f32 to vector<8x128xf32>
    %115 = arith.addf %113, %114 : vector<8x128xf32>
    %116 = arith.mulf %115, %102 : vector<8x128xf32>
    %cst_56 = arith.constant 0.000000e+00 : f32
    %117 = vector.broadcast %cst_56 : f32 to vector<8x128xf32>
    %118 = arith.subf %117, %96 : vector<8x128xf32>
    %119 = arith.mulf %118, %96 : vector<8x128xf32>
    %120 = math.exp %119 : vector<8x128xf32>
    %121 = arith.mulf %116, %120 : vector<8x128xf32>
    %cst_57 = arith.constant 1.000000e+00 : f32
    %122 = vector.broadcast %cst_57 : f32 to vector<8x128xf32>
    %123 = arith.subf %122, %121 : vector<8x128xf32>
    %cst_58 = arith.constant 0.000000e+00 : f32
    %124 = vector.broadcast %cst_58 : f32 to vector<8x128xf32>
    %125 = arith.cmpf oge, %95, %124 : vector<8x128xf32>
    %cst_59 = arith.constant 0.000000e+00 : f32
    %126 = vector.broadcast %cst_59 : f32 to vector<8x128xf32>
    %127 = arith.subf %126, %123 : vector<8x128xf32>
    %128 = arith.select %125, %123, %127 : vector<8x128xi1>, vector<8x128xf32>
    %cst_60 = arith.constant 1.000000e+00 : f32
    %129 = vector.broadcast %cst_60 : f32 to vector<8x128xf32>
    %130 = arith.addf %129, %128 : vector<8x128xf32>
    %131 = arith.mulf %93, %130 : vector<8x128xf32>
    %132 = arith.mulf %90, %131 : vector<8x128xf32>
    %133 = arith.truncf %132 : vector<8x128xf32> to vector<8x128xbf16>
    %c0_61 = arith.constant 0 : index
    %c0_62 = arith.constant 0 : index
    %134 = vector.load %arg14[%c0_61, %c0_62] : memref<128x32xbf16, #tpu.memory_space<vmem>>, vector<128x32xbf16>
    %cst_63 = arith.constant dense<0.000000e+00> : vector<8x32xf32>
    %135 = tpu.matmul %133, %134, %cst_63 {dimension_numbers = #tpu.dot_dimension_numbers<[1], [0], [0], [1], [0, 0, 1, 1], [], []>} : vector<8x128xbf16>, vector<128x32xbf16>, vector<8x32xf32> -> vector<8x32xf32>
    %c0_64 = arith.constant 0 : index
    %c0_65 = arith.constant 0 : index
    %136 = vector.load %arg15[%c0_64, %c0_65] : memref<1x32xf32, #tpu.memory_space<vmem>>, vector<1x32xf32>
    %137 = vector.broadcast %136 : vector<1x32xf32> to vector<8x32xf32>
    %138 = arith.addf %135, %137 : vector<8x32xf32>
    %139 = arith.addf %59, %138 : vector<8x32xf32>
    %c0_66 = arith.constant 0 : index
    %c0_67 = arith.constant 0 : index
    %c0_68 = arith.constant 0 : index
    %140 = vector.load %arg16[%c0_66, %c0_67, %c0_68] : memref<1x8x32xf32, #tpu.memory_space<vmem>>, vector<1x8x32xf32>
    %141 = vector.shape_cast %140 : vector<1x8x32xf32> to vector<8x32xf32>
    %142 = vector.shape_cast %139 : vector<8x32xf32> to vector<1x8x32xf32>
    tpu.vector_store %arg16[%c0_66, %c0_67, %c0_68], %142 {strides = array<i32>} : memref<1x8x32xf32, #tpu.memory_space<vmem>>, vector<1x8x32xf32>,
    return
  }
  func.func @transform_0(%arg0: i32, %arg1: i32) -> (i32, i32, i32) {
    %c0_i32 = arith.constant 0 : i32
    %c0_i32_0 = arith.constant 0 : i32
    return %arg0, %arg1, %c0_i32 : i32, i32, i32
  }
  func.func @transform_1(%arg0: i32, %arg1: i32) -> (i32, i32, i32) {
    %c0_i32 = arith.constant 0 : i32
    %c0_i32_0 = arith.constant 0 : i32
    %c0_i32_1 = arith.constant 0 : i32
    return %arg0, %c0_i32, %c0_i32_0 : i32, i32, i32
  }
  func.func @transform_2(%arg0: i32, %arg1: i32) -> (i32, i32) {
    %c0_i32 = arith.constant 0 : i32
    %c0_i32_0 = arith.constant 0 : i32
    %c0_i32_1 = arith.constant 0 : i32
    return %c0_i32, %c0_i32_0 : i32, i32
  }
  func.func @transform_3(%arg0: i32, %arg1: i32) -> (i32, i32) {
    %c0_i32 = arith.constant 0 : i32
    %c0_i32_0 = arith.constant 0 : i32
    %c0_i32_1 = arith.constant 0 : i32
    return %c0_i32, %c0_i32_0 : i32, i32
  }
  func.func @transform_4(%arg0: i32, %arg1: i32) -> (i32, i32) {
    %c0_i32 = arith.constant 0 : i32
    %c0_i32_0 = arith.constant 0 : i32
    %c0_i32_1 = arith.constant 0 : i32
    return %c0_i32, %c0_i32_0 : i32, i32
  }
  func.func @transform_5(%arg0: i32, %arg1: i32) -> (i32, i32) {
    %c0_i32 = arith.constant 0 : i32
    %c0_i32_0 = arith.constant 0 : i32
    %c0_i32_1 = arith.constant 0 : i32
    return %c0_i32, %c0_i32_0 : i32, i32
  }
  func.func @transform_6(%arg0: i32, %arg1: i32) -> (i32, i32, i32) {
    %c0_i32 = arith.constant 0 : i32
    %c0_i32_0 = arith.constant 0 : i32
    %c0_i32_1 = arith.constant 0 : i32
    %c0_i32_2 = arith.constant 0 : i32
    return %c0_i32, %c0_i32_0, %c0_i32_1 : i32, i32, i32
  }
  func.func @transform_7(%arg0: i32, %arg1: i32) -> (i32, i32) {
    %c0_i32 = arith.constant 0 : i32
    %c0_i32_0 = arith.constant 0 : i32
    %c0_i32_1 = arith.constant 0 : i32
    return %c0_i32, %c0_i32_0 : i32, i32
  }
  func.func @transform_8(%arg0: i32, %arg1: i32) -> (i32, i32) {
    %c0_i32 = arith.constant 0 : i32
    %c0_i32_0 = arith.constant 0 : i32
    %c0_i32_1 = arith.constant 0 : i32
    return %c0_i32, %c0_i32_0 : i32, i32
  }
  func.func @transform_9(%arg0: i32, %arg1: i32) -> (i32, i32) {
    %c0_i32 = arith.constant 0 : i32
    %c0_i32_0 = arith.constant 0 : i32
    %c0_i32_1 = arith.constant 0 : i32
    return %c0_i32, %c0_i32_0 : i32, i32
  }
  func.func @transform_10(%arg0: i32, %arg1: i32) -> (i32, i32) {
    %c0_i32 = arith.constant 0 : i32
    %c0_i32_0 = arith.constant 0 : i32
    %c0_i32_1 = arith.constant 0 : i32
    return %c0_i32, %c0_i32_0 : i32, i32
  }
  func.func @transform_11(%arg0: i32, %arg1: i32) -> (i32, i32) {
    %c0_i32 = arith.constant 0 : i32
    %c0_i32_0 = arith.constant 0 : i32
    %c0_i32_1 = arith.constant 0 : i32
    return %c0_i32, %c0_i32_0 : i32, i32
  }
  func.func @transform_12(%arg0: i32, %arg1: i32) -> (i32, i32) {
    %c0_i32 = arith.constant 0 : i32
    %c0_i32_0 = arith.constant 0 : i32
    %c0_i32_1 = arith.constant 0 : i32
    return %c0_i32, %c0_i32_0 : i32, i32
  }
  func.func @transform_13(%arg0: i32, %arg1: i32) -> (i32, i32) {
    %c0_i32 = arith.constant 0 : i32
    %c0_i32_0 = arith.constant 0 : i32
    %c0_i32_1 = arith.constant 0 : i32
    return %c0_i32, %c0_i32_0 : i32, i32
  }
  func.func @transform_14(%arg0: i32, %arg1: i32) -> (i32, i32, i32) {
    %c0_i32 = arith.constant 0 : i32
    %c0_i32_0 = arith.constant 0 : i32
    return %arg0, %arg1, %c0_i32 : i32, i32, i32
  }
}

</mosaic_0001>

<llo_original>
// kernel: tpu_custom_call.1
$region0: #{tpu_custom_call.1}
  #allocation0 [shape = 'u32[]', space=smem, size = 0x4, offset = 0x4, fixed_abs, tag = 'smem constant byte address 0x4 - core index']
  #allocation1 [shape = 'u32[72,128]{1,0:T(1,128)}', space=vmem, size = 0x9000, scoped, tag = 'internal scratch']
  #allocation2 [shape = 'bf16[4,8,16]{2,1,0:T(8,128)(2,1)}', space=vmem, size = 0x2000, scoped, tag = 'scratch operand']
  #allocation3 [shape = 'bf16[4,8,16]{2,1,0:T(8,128)(2,1)}', space=vmem, size = 0x2000, scoped, tag = 'scratch operand']
  #allocation4 [shape = 'bf16[4,8,16]{2,1,0:T(8,128)(2,1)}', space=vmem, size = 0x2000, scoped, tag = 'scratch operand']
  #allocation5 [shape = 'f32[8,32]{1,0:T(8,128)}', space=vmem, size = 0x1000, scoped, tag = 'scratch operand']
  %s0 = inlined_call_operand.vmem [shape: f32[2,8,32], index: 0, kind: input, shape index: {}]
  %s1 = inlined_call_operand.hbm [shape: f32[2,8,32], index: 1, kind: input, shape index: {}]
  %s2 = inlined_call_operand.hbm [shape: f32[1,32], index: 2, kind: input, shape index: {}]
  %s3 = inlined_call_operand.hbm [shape: f32[1,32], index: 3, kind: input, shape index: {}]
  %s4 = inlined_call_operand.hbm [shape: bf16[32,64], index: 4, kind: input, shape index: {}]
  %s5 = inlined_call_operand.hbm [shape: bf16[32,128], index: 5, kind: input, shape index: {}]
  %s6 = inlined_call_operand.vmem [shape: bf16[4,16,32], index: 6, kind: input, shape index: {}]
  %s7 = inlined_call_operand.vmem [shape: f32[1,32], index: 7, kind: input, shape index: {}]
  %s8 = inlined_call_operand.vmem [shape: f32[1,32], index: 8, kind: input, shape index: {}]
  %s9 = inlined_call_operand.vmem [shape: f32[1,32], index: 9, kind: input, shape index: {}]
  %s10 = inlined_call_operand.vmem [shape: bf16[32,256], index: 10, kind: input, shape index: {}]
  %s11 = inlined_call_operand.vmem [shape: f32[1,256], index: 11, kind: input, shape index: {}]
  %s12 = inlined_call_operand.vmem [shape: bf16[128,32], index: 12, kind: input, shape index: {}]
  %s13 = inlined_call_operand.vmem [shape: f32[1,32], index: 13, kind: input, shape index: {}]
  %s14 = inlined_call_operand.hbm [shape: f32[2,8,32], index: 14, kind: output, shape index: {}]
  %s15 = sld [smem:[#allocation0]]
  $region120: #{tpu_custom_call.1} parent=0
    _
  %s17 = ssub.s32 1, %s15
  %s18 = scalar_select 0, %s17, %s15
  $region1: #{tpu_custom_call.1} parent=0
    #allocation6 [shape = 'u8[8192]{0}', space=vmem, size = 0x2000, scoped, tag = 'input window, operand 1']
    #allocation7 [shape = 's32[2]{0}', space=sflag, size = 0x8, scoped, tag = 'scoped memory for tpu_custom_call.1']
    #allocation8 [shape = 's32[2]{0}', space=sflag, size = 0x8, scoped, tag = 'scoped memory for tpu_custom_call.1']
    #allocation9 [shape = 'u8[512]{0}', space=vmem, size = 0x400, scoped, tag = 'input window, operand 2, single buffered']
    #allocation10 [shape = 's32[1]{0}', space=sflag, size = 0x4, scoped, tag = 'scoped memory for tpu_custom_call.1']
    #allocation11 [shape = 'u8[512]{0}', space=vmem, size = 0x400, scoped, tag = 'input window, operand 3, single buffered']
    #allocation12 [shape = 'u8[8192]{0}', space=vmem, size = 0x2000, scoped, tag = 'input window, operand 4, single buffered']
    #allocation13 [shape = 's32[1]{0}', space=sflag, size = 0x4, scoped, tag = 'scoped memory for tpu_custom_call.1']
    #allocation14 [shape = 'u8[8192]{0}', space=vmem, size = 0x2000, scoped, tag = 'input window, operand 5, single buffered']
    #allocation15 [shape = 'u8[8192]{0}', space=vmem, size = 0x2000, scoped, tag = 'output window, operand 0']
    %19 = vsyncpa [#allocation7], 0
    %s20 = scalar_lea.sflag [#allocation7], 1
    %21 = vsyncpa %s20, 0
    %22 = vsyncpa [#allocation10], 0
    %23 = vsyncpa [#allocation13], 0
    %24 = vsyncpa [#allocation8], 0
    %s25 = scalar_lea.sflag [#allocation8], 1
    %26 = vsyncpa %s25, 0
    loop: start=0, step=1, limit=4
    $region2: #{tpu_custom_call.1} parent=1 // loop_pre_header
      _
    $region3: #{tpu_custom_call.1} parent=1 // loop_header
      %s28 = sphi 0, %s32
      %p29 = scmp.ge.s32.totalorder %s28, 4
      %s35 = sphi 0, %s47
      %s36 = sphi 0, %s43
      %s37 = sphi 0, %s35
      %s38 = sphi 0, %s36
      %s39 = sphi 0, %s37
      %s40 = sphi 0, %s38
      %s52 = sphi 0, %s54
      %s55 = sphi 0, %s52
      %s56 = sphi 0, %s55
      %s72 = sphi 0, %s56
      %s78 = sphi 0, %s80
      %s81 = sphi 0, %s78
      %s82 = sphi 0, %s81
      %s98 = sphi 0, %s82
      %s102 = sphi 0, %s102
      %s104 = sphi 0, %s102
      %s105 = sphi 0, %s104
      %s119 = sphi 0, %s105
      %s123 = sphi 0, %s123
      %s125 = sphi 0, %s123
      %s126 = sphi 0, %s125
      %s140 = sphi 0, %s126
      %s144 = sphi 0, %s144
      %s146 = sphi 0, %s144
      %s147 = sphi 0, %s146
      %s161 = sphi 0, %s147
      %s165 = sphi 0, %s165
      %s167 = sphi 0, %s165
      %s168 = sphi 0, %s167
      %s182 = sphi 0, %s168
      %s186 = sphi 0, %s186
      %s188 = sphi 0, %s186
      %s189 = sphi 0, %s188
      %s203 = sphi 0, %s189
      %s207 = sphi 0, %s207
      %s209 = sphi 0, %s207
      %s210 = sphi 0, %s209
      %s224 = sphi 0, %s210
      %s228 = sphi 0, %s228
      %s230 = sphi 0, %s228
      %s231 = sphi 0, %s230
      %s245 = sphi 0, %s231
      %s249 = sphi 0, %s249
      %s251 = sphi 0, %s249
      %s252 = sphi 0, %s251
      %s266 = sphi 0, %s252
      %s270 = sphi 0, %s270
      %s272 = sphi 0, %s270
      %s273 = sphi 0, %s272
      %s287 = sphi 0, %s273
      %s291 = sphi 0, %s291
      %s293 = sphi 0, %s291
      %s294 = sphi 0, %s293
      %s308 = sphi 0, %s294
      %s312 = sphi 0, %s312
      %s314 = sphi 0, %s312
      %s315 = sphi 0, %s314
      %s329 = sphi 0, %s315
      %s333 = sphi 0, %s333
      %s335 = sphi 0, %s333
      %s336 = sphi 0, %s335
      %s350 = sphi 0, %s336
      %s358 = sphi 0, %s360
      %s361 = sphi 0, %s358
      %s362 = sphi 0, %s361
      %s378 = sphi 0, %s362
    $region4: #{tpu_custom_call.1} parent=1 // loop_header_branch
      %31 = sbr.rel (%p29) target = $region8
    $region5: #{tpu_custom_call.1} parent=1 // loop_body
      %s33 = ssub.s32 %s28, 1
      %s34 = ssub.s32 %s28, 2
      %s41 = sadd.s32 1, %s36
      %p42 = scmp.ge.s32.totalorder %s41, 1
      %s43 = scalar_select %p42, 0, %s41
      %s44 = sadd.s32 1, %s35
      %s45 = scalar_select %p42, %s44, %s35
      %p46 = scmp.ge.s32.totalorder %s45, 2
      %s47 = scalar_select %p46, 0, %s45
      %s48 = ssub.s32 %s35, %s47
      %s49 = ssub.s32 %s36, %s43
      %s50 = sor.u32 %s48, %s49
      %p51 = scmp.eq.s32.totalorder %s50, 0
      %s53 = sadd.s32 %s52, 1
      %s54 = scalar_select %p51, %s52, %s53
      %p57 = pneg %p51
      %p58 = scmp.eq.s32.totalorder %s28, 1
      %p59 = por %p57, %p58
      %p60 = scmp.ne.s32.totalorder %s52, %s55
      %p61 = scmp.eq.s32.totalorder %s28, 0
      %p62 = por %p60, %p61
      %p63 = scmp.ne.s32.totalorder %s52, %s55
      %p64 = scmp.eq.s32.totalorder %s33, 1
      %p65 = por %p63, %p64
      %p66 = scmp.ne.s32.totalorder %s55, %s56
      %p67 = scmp.eq.s32.totalorder %s33, 0
      %p68 = por %p66, %p67
      %p69 = scmp.ne.s32.totalorder %s55, %s56
      %p70 = scmp.eq.s32.totalorder %s34, 1
      %p71 = por %p69, %p70
      %p73 = scmp.ne.s32.totalorder %s56, %s72
      %p74 = scmp.eq.s32.totalorder %s34, 0
      %p75 = por %p73, %p74
      %s76 = ssub.s32 %s35, %s47
      %p77 = scmp.eq.s32.totalorder %s76, 0
      %s79 = sadd.s32 %s78, 1
      %s80 = scalar_select %p77, %s78, %s79
      %p83 = pneg %p77
      %p84 = scmp.eq.s32.totalorder %s28, 1
      %p85 = por %p83, %p84
      %p86 = scmp.ne.s32.totalorder %s78, %s81
      %p87 = scmp.eq.s32.totalorder %s28, 0
      %p88 = por %p86, %p87
      %p89 = scmp.ne.s32.totalorder %s78, %s81
      %p90 = scmp.eq.s32.totalorder %s33, 1
      %p91 = por %p89, %p90
      %p92 = scmp.ne.s32.totalorder %s81, %s82
      %p93 = scmp.eq.s32.totalorder %s33, 0
      %p94 = por %p92, %p93
      %p95 = scmp.ne.s32.totalorder %s81, %s82
      %p96 = scmp.eq.s32.totalorder %s34, 1
      %p97 = por %p95, %p96
      %p99 = scmp.ne.s32.totalorder %s82, %s98
      %p100 = scmp.eq.s32.totalorder %s34, 0
      %p101 = por %p99, %p100
      %s103 = sadd.s32 %s102, 1
      %p106 = scmp.eq.s32.totalorder %s28, 1
      %p107 = scmp.ne.s32.totalorder %s102, %s104
      %p108 = scmp.eq.s32.totalorder %s28, 0
      %p109 = por %p107, %p108
      %p110 = scmp.ne.s32.totalorder %s102, %s104
      %p111 = scmp.eq.s32.totalorder %s33, 1
      %p112 = por %p110, %p111
      %p113 = scmp.ne.s32.totalorder %s104, %s105
      %p114 = scmp.eq.s32.totalorder %s33, 0
      %p115 = por %p113, %p114
      %p116 = scmp.ne.s32.totalorder %s104, %s105
      %p117 = scmp.eq.s32.totalorder %s34, 1
      %p118 = por %p116, %p117
      %p120 = scmp.ne.s32.totalorder %s105, %s119
      %p121 = scmp.eq.s32.totalorder %s34, 0
      %p122 = por %p120, %p121
      %s124 = sadd.s32 %s123, 1
      %p127 = scmp.eq.s32.totalorder %s28, 1
      %p128 = scmp.ne.s32.totalorder %s123, %s125
      %p129 = scmp.eq.s32.totalorder %s28, 0
      %p130 = por %p128, %p129
      %p131 = scmp.ne.s32.totalorder %s123, %s125
      %p132 = scmp.eq.s32.totalorder %s33, 1
      %p133 = por %p131, %p132
      %p134 = scmp.ne.s32.totalorder %s125, %s126
      %p135 = scmp.eq.s32.totalorder %s33, 0
      %p136 = por %p134, %p135
      %p137 = scmp.ne.s32.totalorder %s125, %s126
      %p138 = scmp.eq.s32.totalorder %s34, 1
      %p139 = por %p137, %p138
      %p141 = scmp.ne.s32.totalorder %s126, %s140
      %p142 = scmp.eq.s32.totalorder %s34, 0
      %p143 = por %p141, %p142
      %s145 = sadd.s32 %s144, 1
      %p148 = scmp.eq.s32.totalorder %s28, 1
      %p149 = scmp.ne.s32.totalorder %s144, %s146
      %p150 = scmp.eq.s32.totalorder %s28, 0
      %p151 = por %p149, %p150
      %p152 = scmp.ne.s32.totalorder %s144, %s146
      %p153 = scmp.eq.s32.totalorder %s33, 1
      %p154 = por %p152, %p153
      %p155 = scmp.ne.s32.totalorder %s146, %s147
      %p156 = scmp.eq.s32.totalorder %s33, 0
      %p157 = por %p155, %p156
      %p158 = scmp.ne.s32.totalorder %s146, %s147
      %p159 = scmp.eq.s32.totalorder %s34, 1
      %p160 = por %p158, %p159
      %p162 = scmp.ne.s32.totalorder %s147, %s161
      %p163 = scmp.eq.s32.totalorder %s34, 0
      %p164 = por %p162, %p163
      %s166 = sadd.s32 %s165, 1
      %p169 = scmp.eq.s32.totalorder %s28, 1
      %p170 = scmp.ne.s32.totalorder %s165, %s167
      %p171 = scmp.eq.s32.totalorder %s28, 0
      %p172 = por %p170, %p171
      %p173 = scmp.ne.s32.totalorder %s165, %s167
      %p174 = scmp.eq.s32.totalorder %s33, 1
      %p175 = por %p173, %p174
      %p176 = scmp.ne.s32.totalorder %s167, %s168
      %p177 = scmp.eq.s32.totalorder %s33, 0
      %p178 = por %p176, %p177
      %p179 = scmp.ne.s32.totalorder %s167, %s168
      %p180 = scmp.eq.s32.totalorder %s34, 1
      %p181 = por %p179, %p180
      %p183 = scmp.ne.s32.totalorder %s168, %s182
      %p184 = scmp.eq.s32.totalorder %s34, 0
      %p185 = por %p183, %p184
      %s187 = sadd.s32 %s186, 1
      %p190 = scmp.eq.s32.totalorder %s28, 1
      %p191 = scmp.ne.s32.totalorder %s186, %s188
      %p192 = scmp.eq.s32.totalorder %s28, 0
      %p193 = por %p191, %p192
      %p194 = scmp.ne.s32.totalorder %s186, %s188
      %p195 = scmp.eq.s32.totalorder %s33, 1
      %p196 = por %p194, %p195
      %p197 = scmp.ne.s32.totalorder %s188, %s189
      %p198 = scmp.eq.s32.totalorder %s33, 0
      %p199 = por %p197, %p198
      %p200 = scmp.ne.s32.totalorder %s188, %s189
      %p201 = scmp.eq.s32.totalorder %s34, 1
      %p202 = por %p200, %p201
      %p204 = scmp.ne.s32.totalorder %s189, %s203
      %p205 = scmp.eq.s32.totalorder %s34, 0
      %p206 = por %p204, %p205
      %s208 = sadd.s32 %s207, 1
      %p211 = scmp.eq.s32.totalorder %s28, 1
      %p212 = scmp.ne.s32.totalorder %s207, %s209
      %p213 = scmp.eq.s32.totalorder %s28, 0
      %p214 = por %p212, %p213
      %p215 = scmp.ne.s32.totalorder %s207, %s209
      %p216 = scmp.eq.s32.totalorder %s33, 1
      %p217 = por %p215, %p216
      %p218 = scmp.ne.s32.totalorder %s209, %s210
      %p219 = scmp.eq.s32.totalorder %s33, 0
      %p220 = por %p218, %p219
      %p221 = scmp.ne.s32.totalorder %s209, %s210
      %p222 = scmp.eq.s32.totalorder %s34, 1
      %p223 = por %p221, %p222
      %p225 = scmp.ne.s32.totalorder %s210, %s224
      %p226 = scmp.eq.s32.totalorder %s34, 0
      %p227 = por %p225, %p226
      %s229 = sadd.s32 %s228, 1
      %p232 = scmp.eq.s32.totalorder %s28, 1
      %p233 = scmp.ne.s32.totalorder %s228, %s230
      %p234 = scmp.eq.s32.totalorder %s28, 0
      %p235 = por %p233, %p234
      %p236 = scmp.ne.s32.totalorder %s228, %s230
      %p237 = scmp.eq.s32.totalorder %s33, 1
      %p238 = por %p236, %p237
      %p239 = scmp.ne.s32.totalorder %s230, %s231
      %p240 = scmp.eq.s32.totalorder %s33, 0
      %p241 = por %p239, %p240
      %p242 = scmp.ne.s32.totalorder %s230, %s231
      %p243 = scmp.eq.s32.totalorder %s34, 1
      %p244 = por %p242, %p243
      %p246 = scmp.ne.s32.totalorder %s231, %s245
      %p247 = scmp.eq.s32.totalorder %s34, 0
      %p248 = por %p246, %p247
      %s250 = sadd.s32 %s249, 1
      %p253 = scmp.eq.s32.totalorder %s28, 1
      %p254 = scmp.ne.s32.totalorder %s249, %s251
      %p255 = scmp.eq.s32.totalorder %s28, 0
      %p256 = por %p254, %p255
      %p257 = scmp.ne.s32.totalorder %s249, %s251
      %p258 = scmp.eq.s32.totalorder %s33, 1
      %p259 = por %p257, %p258
      %p260 = scmp.ne.s32.totalorder %s251, %s252
      %p261 = scmp.eq.s32.totalorder %s33, 0
      %p262 = por %p260, %p261
      %p263 = scmp.ne.s32.totalorder %s251, %s252
      %p264 = scmp.eq.s32.totalorder %s34, 1
      %p265 = por %p263, %p264
      %p267 = scmp.ne.s32.totalorder %s252, %s266
      %p268 = scmp.eq.s32.totalorder %s34, 0
      %p269 = por %p267, %p268
      %s271 = sadd.s32 %s270, 1
      %p274 = scmp.eq.s32.totalorder %s28, 1
      %p275 = scmp.ne.s32.totalorder %s270, %s272
      %p276 = scmp.eq.s32.totalorder %s28, 0
      %p277 = por %p275, %p276
      %p278 = scmp.ne.s32.totalorder %s270, %s272
      %p279 = scmp.eq.s32.totalorder %s33, 1
      %p280 = por %p278, %p279
      %p281 = scmp.ne.s32.totalorder %s272, %s273
      %p282 = scmp.eq.s32.totalorder %s33, 0
      %p283 = por %p281, %p282
      %p284 = scmp.ne.s32.totalorder %s272, %s273
      %p285 = scmp.eq.s32.totalorder %s34, 1
      %p286 = por %p284, %p285
      %p288 = scmp.ne.s32.totalorder %s273, %s287
      %p289 = scmp.eq.s32.totalorder %s34, 0
      %p290 = por %p288, %p289
      %s292 = sadd.s32 %s291, 1
      %p295 = scmp.eq.s32.totalorder %s28, 1
      %p296 = scmp.ne.s32.totalorder %s291, %s293
      %p297 = scmp.eq.s32.totalorder %s28, 0
      %p298 = por %p296, %p297
      %p299 = scmp.ne.s32.totalorder %s291, %s293
      %p300 = scmp.eq.s32.totalorder %s33, 1
      %p301 = por %p299, %p300
      %p302 = scmp.ne.s32.totalorder %s293, %s294
      %p303 = scmp.eq.s32.totalorder %s33, 0
      %p304 = por %p302, %p303
      %p305 = scmp.ne.s32.totalorder %s293, %s294
      %p306 = scmp.eq.s32.totalorder %s34, 1
      %p307 = por %p305, %p306
      %p309 = scmp.ne.s32.totalorder %s294, %s308
      %p310 = scmp.eq.s32.totalorder %s34, 0
      %p311 = por %p309, %p310
      %s313 = sadd.s32 %s312, 1
      %p316 = scmp.eq.s32.totalorder %s28, 1
      %p317 = scmp.ne.s32.totalorder %s312, %s314
      %p318 = scmp.eq.s32.totalorder %s28, 0
      %p319 = por %p317, %p318
      %p320 = scmp.ne.s32.totalorder %s312, %s314
      %p321 = scmp.eq.s32.totalorder %s33, 1
      %p322 = por %p320, %p321
      %p323 = scmp.ne.s32.totalorder %s314, %s315
      %p324 = scmp.eq.s32.totalorder %s33, 0
      %p325 = por %p323, %p324
      %p326 = scmp.ne.s32.totalorder %s314, %s315
      %p327 = scmp.eq.s32.totalorder %s34, 1
      %p328 = por %p326, %p327
      %p330 = scmp.ne.s32.totalorder %s315, %s329
      %p331 = scmp.eq.s32.totalorder %s34, 0
      %p332 = por %p330, %p331
      %s334 = sadd.s32 %s333, 1
      %p337 = scmp.eq.s32.totalorder %s28, 1
      %p338 = scmp.ne.s32.totalorder %s333, %s335
      %p339 = scmp.eq.s32.totalorder %s28, 0
      %p340 = por %p338, %p339
      %p341 = scmp.ne.s32.totalorder %s333, %s335
      %p342 = scmp.eq.s32.totalorder %s33, 1
      %p343 = por %p341, %p342
      %p344 = scmp.ne.s32.totalorder %s335, %s336
      %p345 = scmp.eq.s32.totalorder %s33, 0
      %p346 = por %p344, %p345
      %p347 = scmp.ne.s32.totalorder %s335, %s336
      %p348 = scmp.eq.s32.totalorder %s34, 1
      %p349 = por %p347, %p348
      %p351 = scmp.ne.s32.totalorder %s336, %s350
      %p352 = scmp.eq.s32.totalorder %s34, 0
      %p353 = por %p351, %p352
      %s354 = ssub.s32 %s35, %s47
      %s355 = ssub.s32 %s36, %s43
      %s356 = sor.u32 %s354, %s355
      %p357 = scmp.eq.s32.totalorder %s356, 0
      %s359 = sadd.s32 %s358, 1
      %s360 = scalar_select %p357, %s358, %s359
      %p363 = pneg %p357
      %p364 = scmp.eq.s32.totalorder %s28, 1
      %p365 = por %p363, %p364
      %p366 = scmp.ne.s32.totalorder %s358, %s361
      %p367 = scmp.eq.s32.totalorder %s28, 0
      %p368 = por %p366, %p367
      %p369 = scmp.ne.s32.totalorder %s358, %s361
      %p370 = scmp.eq.s32.totalorder %s33, 1
      %p371 = por %p369, %p370
      %p372 = scmp.ne.s32.totalorder %s361, %s362
      %p373 = scmp.eq.s32.totalorder %s33, 0
      %p374 = por %p372, %p373
      %p375 = scmp.ne.s32.totalorder %s361, %s362
      %p376 = scmp.eq.s32.totalorder %s34, 1
      %p377 = por %p375, %p376
      %p379 = scmp.ne.s32.totalorder %s362, %s378
      %p380 = scmp.eq.s32.totalorder %s34, 0
      %p381 = por %p379, %p380
      %p382 = scmp.le.s32.totalorder 1, %s28
      %p383 = scmp.lt.s32.totalorder %s28, 3
      %p384 = pnand %p382, %p383
      %p385 = pneg %p384
      // Predicated region
      $region9: #{tpu_custom_call.1} parent=5 // pred_check
        _
      $region10: #{tpu_custom_call.1} parent=5 // pred_check_branch
        %387 = sbr.rel (%p384) target = $region12
      $region11: #{tpu_custom_call.1} parent=5 // pred_region
        %s388 = ssub.s32 %s28, 1
        // Predicated region
        $region13: #{tpu_custom_call.1} parent=11 // pred_check
          %p389 = pneg %p115
        $region14: #{tpu_custom_call.1} parent=11 // pred_check_branch
          %391 = sbr.rel (%p389) target = $region16
        $region15: #{tpu_custom_call.1} parent=11 // pred_region
          %393 = vsyncadd [#allocation10], 0
          %s395 = sshll.u32 %s2, 4
          %s396 = int_to_ptr.hbm [resolvable:$true] %s395
          %s397 = sshll.u32 [#allocation9], 4
          %s398 = int_to_ptr.vmem [resolvable:$true] %s397
          %400 = dma.hbm_to_vmem [thread:$0]  %s396, 16, %s398, [#allocation10]
        $region16: #{tpu_custom_call.1} parent=11 // pred_fallthru
          _
        // Predicated region
        $region17: #{tpu_custom_call.1} parent=11 // pred_check
          %p401 = pneg %p136
        $region18: #{tpu_custom_call.1} parent=11 // pred_check_branch
          %403 = sbr.rel (%p401) target = $region20
        $region19: #{tpu_custom_call.1} parent=11 // pred_region
          %405 = vsyncadd [#allocation10], 0
          %s407 = sshll.u32 %s3, 4
          %s408 = int_to_ptr.hbm [resolvable:$true] %s407
          %s409 = sshll.u32 [#allocation11], 4
          %s410 = int_to_ptr.vmem [resolvable:$true] %s409
          %412 = dma.hbm_to_vmem [thread:$0]  %s408, 16, %s410, [#allocation10]
        $region20: #{tpu_custom_call.1} parent=11 // pred_fallthru
          _
        // Predicated region
        $region21: #{tpu_custom_call.1} parent=11 // pred_check
          %p413 = pneg %p157
        $region22: #{tpu_custom_call.1} parent=11 // pred_check_branch
          %415 = sbr.rel (%p413) target = $region24
        $region23: #{tpu_custom_call.1} parent=11 // pred_region
          %417 = vsyncadd [#allocation13], 0
          %s418 = sshll.u32 %s4, 4
          %s419 = int_to_ptr.hbm [resolvable:$true] %s418
          %s420 = sshll.u32 [#allocation12], 4
          %s421 = int_to_ptr.vmem [resolvable:$true] %s420
          %426 = dma.hbm_to_vmem [thread:$0]  %s419, 256, %s421, [#allocation13], 64, 64, 4
        $region24: #{tpu_custom_call.1} parent=11 // pred_fallthru
          _
        // Predicated region
        $region25: #{tpu_custom_call.1} parent=11 // pred_check
          %p427 = pneg %p178
        $region26: #{tpu_custom_call.1} parent=11 // pred_check_branch
          %429 = sbr.rel (%p427) target = $region28
        $region27: #{tpu_custom_call.1} parent=11 // pred_region
          %431 = vsyncadd [#allocation13], 0
          %s432 = sshll.u32 %s5, 4
          %s433 = int_to_ptr.hbm [resolvable:$true] %s432
          %s434 = sshll.u32 [#allocation14], 4
          %s435 = int_to_ptr.vmem [resolvable:$true] %s434
          %440 = dma.hbm_to_vmem [thread:$0]  %s433, 256, %s435, [#allocation13], 64, 64, 4
        $region28: #{tpu_custom_call.1} parent=11 // pred_fallthru
          _
        // Predicated region
        $region29: #{tpu_custom_call.1} parent=11 // pred_check
          %p441 = pneg %p199
        $region30: #{tpu_custom_call.1} parent=11 // pred_check_branch
          %443 = sbr.rel (%p441) target = $region32
        $region31: #{tpu_custom_call.1} parent=11 // pred_region
          _
        $region32: #{tpu_custom_call.1} parent=11 // pred_fallthru
          _
        // Predicated region
        $region33: #{tpu_custom_call.1} parent=11 // pred_check
          %p444 = pneg %p220
        $region34: #{tpu_custom_call.1} parent=11 // pred_check_branch
          %446 = sbr.rel (%p444) target = $region36
        $region35: #{tpu_custom_call.1} parent=11 // pred_region
          _
        $region36: #{tpu_custom_call.1} parent=11 // pred_fallthru
          _
        // Predicated region
        $region37: #{tpu_custom_call.1} parent=11 // pred_check
          %p447 = pneg %p241
        $region38: #{tpu_custom_call.1} parent=11 // pred_check_branch
          %449 = sbr.rel (%p447) target = $region40
        $region39: #{tpu_custom_call.1} parent=11 // pred_region
          _
        $region40: #{tpu_custom_call.1} parent=11 // pred_fallthru
          _
        // Predicated region
        $region41: #{tpu_custom_call.1} parent=11 // pred_check
          %p450 = pneg %p262
        $region42: #{tpu_custom_call.1} parent=11 // pred_check_branch
          %452 = sbr.rel (%p450) target = $region44
        $region43: #{tpu_custom_call.1} parent=11 // pred_region
          _
        $region44: #{tpu_custom_call.1} parent=11 // pred_fallthru
          _
        // Predicated region
        $region45: #{tpu_custom_call.1} parent=11 // pred_check
          %p453 = pneg %p283
        $region46: #{tpu_custom_call.1} parent=11 // pred_check_branch
          %455 = sbr.rel (%p453) target = $region48
        $region47: #{tpu_custom_call.1} parent=11 // pred_region
          _
        $region48: #{tpu_custom_call.1} parent=11 // pred_fallthru
          _
        // Predicated region
        $region49: #{tpu_custom_call.1} parent=11 // pred_check
          %p456 = pneg %p304
        $region50: #{tpu_custom_call.1} parent=11 // pred_check_branch
          %458 = sbr.rel (%p456) target = $region52
        $region51: #{tpu_custom_call.1} parent=11 // pred_region
          _
        $region52: #{tpu_custom_call.1} parent=11 // pred_fallthru
          _
        // Predicated region
        $region53: #{tpu_custom_call.1} parent=11 // pred_check
          %p459 = pneg %p325
        $region54: #{tpu_custom_call.1} parent=11 // pred_check_branch
          %461 = sbr.rel (%p459) target = $region56
        $region55: #{tpu_custom_call.1} parent=11 // pred_region
          _
        $region56: #{tpu_custom_call.1} parent=11 // pred_fallthru
          _
        // Predicated region
        $region57: #{tpu_custom_call.1} parent=11 // pred_check
          %p462 = pneg %p346
        $region58: #{tpu_custom_call.1} parent=11 // pred_check_branch
          %464 = sbr.rel (%p462) target = $region60
        $region59: #{tpu_custom_call.1} parent=11 // pred_region
          _
        $region60: #{tpu_custom_call.1} parent=11 // pred_fallthru
          _
      $region12: #{tpu_custom_call.1} parent=5 // pred_fallthru
        _
      %p465 = scmp.lt.s32.totalorder %s28, 2
      // Predicated region
      $region61: #{tpu_custom_call.1} parent=5 // pred_check
        %p466 = pneg %p465
      $region62: #{tpu_custom_call.1} parent=5 // pred_check_branch
        %468 = sbr.rel (%p466) target = $region64
      $region63: #{tpu_custom_call.1} parent=5 // pred_region
        // Predicated region
        $region65: #{tpu_custom_call.1} parent=63 // pred_check
          %p469 = pneg %p62
        $region66: #{tpu_custom_call.1} parent=63 // pred_check_branch
          %471 = sbr.rel (%p469) target = $region68
        $region67: #{tpu_custom_call.1} parent=63 // pred_region
          %p472 = scmp.lt.s32.totalorder %s35, 1
          %s473 = scalar_select %p472, %s35, 1
          %p474 = scmp.lt.s32.totalorder %s36, 0
          %s475 = scalar_select %p474, %s36, 0
          %s476 = sadd.s32 %s475, %s473
          %s477 = smul.addr %s476, 8
          %s478 = scalar_lea.vmem %s0, %s477
        $region68: #{tpu_custom_call.1} parent=63 // pred_fallthru
          _
        // Predicated region
        $region69: #{tpu_custom_call.1} parent=63 // pred_check
          %p479 = pneg %p88
        $region70: #{tpu_custom_call.1} parent=63 // pred_check_branch
          %481 = sbr.rel (%p479) target = $region72
        $region71: #{tpu_custom_call.1} parent=63 // pred_region
          %s482 = sand.u32 %s78, 1
          %s483 = scalar_lea.sflag [#allocation7], %s482
          %s484 = sand.u32 %s78, 1
          %s485 = smul.addr %s484, 8
          %s486 = scalar_lea.vmem [#allocation6], %s485
          %488 = vsyncadd %s483, 0
          %s489 = smul.addr %s35, 8
          %s490 = scalar_lea.hbm %s1, %s489
          %s492 = sshll.u32 %s490, 4
          %s493 = int_to_ptr.hbm [resolvable:$true] %s492
          %s494 = sshll.u32 %s486, 4
          %s495 = int_to_ptr.vmem [resolvable:$true] %s494
          %497 = dma.hbm_to_vmem [thread:$0]  %s493, 128, %s495, %s483
        $region72: #{tpu_custom_call.1} parent=63 // pred_fallthru
          _
      $region64: #{tpu_custom_call.1} parent=5 // pred_fallthru
        _
      %p498 = scmp.le.s32.totalorder 1, %s28
      %p499 = scmp.lt.s32.totalorder %s28, 3
      %p500 = pnand %p498, %p499
      %p501 = pneg %p500
      // Predicated region
      $region73: #{tpu_custom_call.1} parent=5 // pred_check
        _
      $region74: #{tpu_custom_call.1} parent=5 // pred_check_branch
        %503 = sbr.rel (%p500) target = $region76
      $region75: #{tpu_custom_call.1} parent=5 // pred_region
        %s504 = ssub.s32 %s28, 1
        %s505 = sand.u32 %s81, 1
        %s506 = scalar_lea.sflag [#allocation7], %s505
        %s507 = sand.u32 %s81, 1
        %s508 = smul.addr %s507, 8
        %s509 = scalar_lea.vmem [#allocation6], %s508
        // Predicated region
        $region77: #{tpu_custom_call.1} parent=75 // pred_check
          %p510 = pneg %p94
        $region78: #{tpu_custom_call.1} parent=75 // pred_check_branch
          %512 = sbr.rel (%p510) target = $region80
        $region79: #{tpu_custom_call.1} parent=75 // pred_region
          %514 = dma.done %s506, 128
        $region80: #{tpu_custom_call.1} parent=75 // pred_fallthru
          _
        // Predicated region
        $region81: #{tpu_custom_call.1} parent=75 // pred_check
          %p515 = pneg %p115
        $region82: #{tpu_custom_call.1} parent=75 // pred_check_branch
          %517 = sbr.rel (%p515) target = $region84
        $region83: #{tpu_custom_call.1} parent=75 // pred_region
          %519 = dma.done [#allocation10], 16
        $region84: #{tpu_custom_call.1} parent=75 // pred_fallthru
          _
        // Predicated region
        $region85: #{tpu_custom_call.1} parent=75 // pred_check
          %p520 = pneg %p136
        $region86: #{tpu_custom_call.1} parent=75 // pred_check_branch
          %522 = sbr.rel (%p520) target = $region88
        $region87: #{tpu_custom_call.1} parent=75 // pred_region
          %524 = dma.done [#allocation10], 16
        $region88: #{tpu_custom_call.1} parent=75 // pred_fallthru
          _
        // Predicated region
        $region89: #{tpu_custom_call.1} parent=75 // pred_check
          %p525 = pneg %p157
        $region90: #{tpu_custom_call.1} parent=75 // pred_check_branch
          %527 = sbr.rel (%p525) target = $region92
        $region91: #{tpu_custom_call.1} parent=75 // pred_region
          %529 = dma.done [#allocation13], 256
        $region92: #{tpu_custom_call.1} parent=75 // pred_fallthru
          _
        // Predicated region
        $region93: #{tpu_custom_call.1} parent=75 // pred_check
          %p530 = pneg %p178
        $region94: #{tpu_custom_call.1} parent=75 // pred_check_branch
          %532 = sbr.rel (%p530) target = $region96
        $region95: #{tpu_custom_call.1} parent=75 // pred_region
          %534 = dma.done [#allocation13], 256
        $region96: #{tpu_custom_call.1} parent=75 // pred_fallthru
          _
        %p535 = scmp.lt.s32.totalorder %s37, 1
        %s536 = scalar_select %p535, %s37, 1
        %p537 = scmp.lt.s32.totalorder %s38, 0
        %s538 = scalar_select %p537, %s38, 0
        %s539 = sadd.s32 %s538, %s536
        %s540 = smul.addr %s539, 8
        %s541 = scalar_lea.vmem %s0, %s540
        %p542 = pneg %p68
        %p543 = pneg %p65
        %s544 = sand.u32 %s81, 1
        %s545 = scalar_lea.sflag [#allocation7], %s544
        %s546 = sand.u32 %s81, 1
        %s547 = smul.addr %s546, 8
        %s548 = scalar_lea.vmem [#allocation6], %s547
        %p549 = pneg %p94
        %p550 = pneg %p91
        %p551 = pneg %p115
        %p552 = pneg %p112
        %p553 = pneg %p136
        %p554 = pneg %p133
        %p555 = pneg %p157
        %p556 = pneg %p154
        %p557 = pneg %p178
        %p558 = pneg %p175
        %p559 = pneg %p199
        %p560 = pneg %p196
        %p561 = pneg %p220
        %p562 = pneg %p217
        %p563 = pneg %p241
        %p564 = pneg %p238
        %p565 = pneg %p262
        %p566 = pneg %p259
        %p567 = pneg %p283
        %p568 = pneg %p280
        %p569 = pneg %p304
        %p570 = pneg %p301
        %p571 = pneg %p325
        %p572 = pneg %p322
        %p573 = pneg %p346
        %p574 = pneg %p343
        %p575 = pneg %p374
        %p576 = pneg %p371
        %s577 = sand.u32 %s361, 1
        %s578 = scalar_lea.sflag [#allocation8], %s577
        %s579 = sand.u32 %s361, 1
        %s580 = smul.addr %s579, 8
        %s581 = scalar_lea.vmem [#allocation15], %s580
        %p582 = scmp.lt.s32.totalorder %s37, 1
        %s583 = scalar_select %p582, %s37, 1
        %p584 = scmp.lt.s32.totalorder %s38, 0
        %s585 = scalar_select %p584, %s38, 0
        %s586 = sadd.s32 %s585, %s583
        %s587 = smul.addr %s586, 8
        %s588 = scalar_lea.vmem %s0, %s587
        %p590 = scmp.eq.s32.totalorder %s38, 0
        // Predicated region
        $region97: #{tpu_custom_call.1} parent=75 // pred_check
          %p591 = pneg %p590
        $region98: #{tpu_custom_call.1} parent=75 // pred_check_branch
          %593 = sbr.rel (%p591) target = $region100
        $region99: #{tpu_custom_call.1} parent=75 // pred_region
          %v594 = vld [vmem:[%s509] sm:$0xff]
          %vm595 = vcmask 261120
          %v596 = vsel %vm595, %v594, 0.0
          %597 = vadd.xlane.f32.xlu0 %v596
          %v598 = vpop.xlane.xlu0 %597
          %v599 = vrcp.pop 32.0
          %v600 = vmul.f32 32.0, %v599
          %v601 = vsub.f32 1.0, %v600
          %v602 = vmul.f32 %v599, %v601
          %v603 = vadd.f32 %v599, %v602
          %vm604 = vweird.f32 %v599
          %v605 = vsel %vm604, %v599, %v603
          %v606 = vmul.f32 %v598, %v605
          %v607 = vsub.f32 %v594, %v606
          %v608 = vmul.f32 %v607, %v607
          %v609 = vsel %vm595, %v608, 0.0
          %610 = vadd.xlane.f32.xlu0 %v609
          %v611 = vpop.xlane.xlu0 %610
          %v612 = vmul.f32 %v611, %v605
          %v613 = vadd.f32 %v612, 1e-05
          %v614 = vrsqrt.pop %v613
          %v615 = vmul.f32 %v614, %v613
          %v616 = vmul.f32 %v615, %v614
          %v617 = vmul.f32 0.5, %v616
          %v618 = vsub.f32 1.5, %v617
          %v619 = vmul.f32 %v614, %v618
          %vm620 = vweird.f32 %v613
          %vm621 = vweird.f32 %v614
          %vm622 = vmor %vm620, %vm621
          %v623 = vsel %vm622, %v614, %v619
          %v624 = vmul.f32 %v607, %v623
          %v625 = vld [vmem:[#allocation9] sm:$0x1]
          %v627 = vperm.slane %v625, 0
          %v629 = vmul.f32 %v624, %v627
          %v630 = vld [vmem:[#allocation11] sm:$0x1]
          %v632 = vperm.slane %v630, 0
          %v634 = vadd.f32 %v629, %v632
          %v635 = vpack.c.bf16 %v634, %v634
          %v636 = vld [vmem:[#allocation14] sm:$0xf]
          %v637 = vld [vmem:[#allocation14 + $0x4] sm:$0xf]
          %v638 = vld [vmem:[#allocation14 + $0x8] sm:$0xf]
          %v639 = vld [vmem:[#allocation14 + $0xc] sm:$0xf]
          %v644 = vunpack.c.l.b16 %v636
          %v645 = vunpack.c.l.b16 %v637
          %v646 = vunpack.c.l.b16 %v638
          %v647 = vunpack.c.l.b16 %v639
          %v648 = vpack.c.b16 %v645, %v644
          %v649 = vpack.c.b16 %v647, %v646
          %v653 = vsel %vm595, %v635, 0
          %655 = vmatpush.bf16.msra.mxu0 0
          %656 = vmatpush.bf16.msra.mxu0 0
          %657 = vmatpush.bf16.msra.mxu0 0
          %658 = vmatpush.bf16.msra.mxu0 0
          %659 = vmatpush.bf16.msra.mxu0 0
          %660 = vmatpush.bf16.msra.mxu0 0
          %661 = vmatpush.bf16.msra.mxu0 %v649
          %662 = vmatpush.bf16.msra.mxu0 %v648
          %663 = vmatmul.bf16.gmra.mxu0 %v653
          %v664 = vpop.f32.mrf.mxu0
          %v665 = vadd.f32 0.0, %v664
          %v666 = vpop.f32.mrf.mxu0
          %667 = vdwg.mxu0
          %v668 = vpack.c.bf16 %v665, %v665
          %vm669 = vcmask 125952
          %670 = vst.msk [vmem:[#allocation2] sm:$0xf] %vm669, %v668
          %672 = vrot.lane.b32.xlu0 %v668, 64
          %v673 = vpop.permute.xlu0 %672
          %675 = vst.msk [vmem:[#allocation3] sm:$0xf] %vm669, %v673
          %676 = vrot.lane.b32.xlu0 %v668, 112
          %v677 = vpop.permute.xlu0 %676
          %s679 = scalar_lea.vmem [#allocation2], 4
          %680 = vst.msk [vmem:[%s679] sm:$0xf] %vm669, %v677
          %681 = vrot.lane.b32.xlu0 %v668, 48
          %v682 = vpop.permute.xlu0 %681
          %s684 = scalar_lea.vmem [#allocation3], 4
          %685 = vst.msk [vmem:[%s684] sm:$0xf] %vm669, %v682
          %686 = vrot.lane.b32.xlu0 %v668, 96
          %v687 = vpop.permute.xlu0 %686
          %s689 = scalar_lea.vmem [#allocation2], 8
          %690 = vst.msk [vmem:[%s689] sm:$0xf] %vm669, %v687
          %691 = vrot.lane.b32.xlu0 %v668, 32
          %v692 = vpop.permute.xlu0 %691
          %s694 = scalar_lea.vmem [#allocation3], 8
          %695 = vst.msk [vmem:[%s694] sm:$0xf] %vm669, %v692
          %696 = vrot.lane.b32.xlu0 %v668, 80
          %v697 = vpop.permute.xlu0 %696
          %s699 = scalar_lea.vmem [#allocation2], 12
          %700 = vst.msk [vmem:[%s699] sm:$0xf] %vm669, %v697
          %701 = vrot.lane.b32.xlu0 %v668, 16
          %v702 = vpop.permute.xlu0 %701
          %s704 = scalar_lea.vmem [#allocation3], 12
          %705 = vst.msk [vmem:[%s704] sm:$0xf] %vm669, %v702
        $region100: #{tpu_custom_call.1} parent=75 // pred_fallthru
          _
        %v706 = vld [vmem:[%s588] sm:$0xff]
        %vm707 = vcmask 261120
        %v708 = vsel %vm707, %v706, 0.0
        %709 = vadd.xlane.f32.xlu0 %v708
        %v710 = vpop.xlane.xlu0 %709
        %v711 = vrcp.pop 32.0
        %v712 = vmul.f32 32.0, %v711
        %v713 = vsub.f32 1.0, %v712
        %v714 = vmul.f32 %v711, %v713
        %v715 = vadd.f32 %v711, %v714
        %vm716 = vweird.f32 %v711
        %v717 = vsel %vm716, %v711, %v715
        %v718 = vmul.f32 %v710, %v717
        %v719 = vsub.f32 %v706, %v718
        %v720 = vmul.f32 %v719, %v719
        %v721 = vsel %vm707, %v720, 0.0
        %722 = vadd.xlane.f32.xlu0 %v721
        %v723 = vpop.xlane.xlu0 %722
        %v724 = vmul.f32 %v723, %v717
        %v725 = vadd.f32 %v724, 1e-05
        %v726 = vrsqrt.pop %v725
        %v727 = vmul.f32 %v726, %v725
        %v728 = vmul.f32 %v727, %v726
        %v729 = vmul.f32 0.5, %v728
        %v730 = vsub.f32 1.5, %v729
        %v731 = vmul.f32 %v726, %v730
        %vm732 = vweird.f32 %v725
        %vm733 = vweird.f32 %v726
        %vm734 = vmor %vm732, %vm733
        %v735 = vsel %vm734, %v726, %v731
        %v736 = vmul.f32 %v719, %v735
        %v737 = vld [vmem:[#allocation9] sm:$0x1]
        %v739 = vperm.slane %v737, 0
        %v741 = vmul.f32 %v736, %v739
        %v742 = vld [vmem:[#allocation11] sm:$0x1]
        %v744 = vperm.slane %v742, 0
        %v746 = vadd.f32 %v741, %v744
        %v747 = vpack.c.bf16 %v746, %v746
        %v748 = vld [vmem:[#allocation12] sm:$0xf]
        %v749 = vld [vmem:[#allocation12 + $0x4] sm:$0xf]
        %v750 = vld [vmem:[#allocation12 + $0x8] sm:$0xf]
        %v751 = vld [vmem:[#allocation12 + $0xc] sm:$0xf]
        %v756 = vunpack.c.l.b16 %v748
        %v757 = vunpack.c.l.b16 %v749
        %v758 = vunpack.c.l.b16 %v750
        %v759 = vunpack.c.l.b16 %v751
        %v760 = vpack.c.b16 %v757, %v756
        %v761 = vpack.c.b16 %v759, %v758
        %v765 = vsel %vm707, %v747, 0
        %767 = vmatpush.bf16.msra.mxu0 0
        %768 = vmatpush.bf16.msra.mxu0 0
        %769 = vmatpush.bf16.msra.mxu0 0
        %770 = vmatpush.bf16.msra.mxu0 0
        %771 = vmatpush.bf16.msra.mxu0 0
        %772 = vmatpush.bf16.msra.mxu0 0
        %773 = vmatpush.bf16.msra.mxu0 %v761
        %774 = vmatpush.bf16.msra.mxu0 %v760
        %775 = vmatmul.bf16.gmra.mxu0 %v765
        %v776 = vpop.f32.mrf.mxu0
        %v777 = vadd.f32 0.0, %v776
        %v778 = vpop.f32.mrf.mxu0
        %779 = vdwg.mxu0
        %v780 = vpack.c.bf16 %v777, %v777
        %vm781 = vcmask 125952
        %782 = vst.msk [vmem:[#allocation4] sm:$0xf] %vm781, %v780
        %784 = vrot.lane.b32.xlu0 %v780, 112
        %v785 = vpop.permute.xlu0 %784
        %s787 = scalar_lea.vmem [#allocation4], 4
        %788 = vst.msk [vmem:[%s787] sm:$0xf] %vm781, %v785
        %789 = vrot.lane.b32.xlu0 %v780, 96
        %v790 = vpop.permute.xlu0 %789
        %s792 = scalar_lea.vmem [#allocation4], 8
        %793 = vst.msk [vmem:[%s792] sm:$0xf] %vm781, %v790
        %794 = vrot.lane.b32.xlu0 %v780, 80
        %v795 = vpop.permute.xlu0 %794
        %s797 = scalar_lea.vmem [#allocation4], 12
        %798 = vst.msk [vmem:[%s797] sm:$0xf] %vm781, %v795
        %799 = vst.msk [vmem:[#allocation5] sm:$0xff] %vm707, 0.0
        loop: start=0, step=1, limit=4
        $region101: #{tpu_custom_call.1} parent=75 // loop_pre_header
          _
        $region102: #{tpu_custom_call.1} parent=75 // loop_header
          %s801 = sphi 0, %s805
          %p802 = scmp.ge.s32.totalorder %s801, 4
        $region103: #{tpu_custom_call.1} parent=75 // loop_header_branch
          %804 = sbr.rel (%p802) target = $region107
        $region104: #{tpu_custom_call.1} parent=75 // loop_body
          %s806 = smul.addr %s801, 4
          %s807 = scalar_lea.vmem [#allocation4], %s806
          %v808 = vld [vmem:[%s807] sm:$0xf]
          %s809 = smul.addr %s801, 4
          %s810 = scalar_lea.vmem [#allocation2], %s809
          %v811 = vld [vmem:[%s810] sm:$0xf]
          %s812 = smul.addr %s801, 4
          %s813 = scalar_lea.vmem [#allocation3], %s812
          %v814 = vld [vmem:[%s813] sm:$0xf]
          %vm815 = vcmask 130048
          %v817 = vsel %vm815, %v808, 0
          %v820 = vsel %vm815, %v811, 0
          %822 = vmatpush.bf16.xpose.msra.mxu0 0
          %823 = vmatpush.bf16.xpose.msra.mxu0 0
          %824 = vmatpush.bf16.xpose.msra.mxu0 0
          %825 = vmatpush.bf16.xpose.msra.mxu0 0
          %826 = vmatpush.bf16.xpose.msra.mxu0 0
          %827 = vmatpush.bf16.xpose.msra.mxu0 0
          %828 = vmatpush.bf16.xpose.msra.mxu0 0
          %829 = vmatpush.bf16.xpose.msra.mxu0 %v820
          %830 = vmatmul.bf16.gmra.mxu0 %v817
          %v831 = vpop.f32.mrf.mxu0
          %v832 = vadd.f32 0.0, %v831
          %v833 = vpop.f32.mrf.mxu0
          %834 = vdwg.mxu0
          %vm835 = vcmask 64512
          %v836 = vsel %vm835, %v832, -inf
          %837 = vmax.xlane.f32.xlu0 %v836
          %v838 = vpop.xlane.xlu0 %837
          %v839 = vsub.f32 %v832, %v838
          %v840 = vmul.f32 %v839, 1.442695
          %v841 = vpow.pop %v840
          %v842 = vsel %vm835, %v841, 0.0
          %843 = vadd.xlane.f32.xlu0 %v842
          %v844 = vpop.xlane.xlu0 %843
          %v845 = vrcp.pop %v844
          %v846 = vmul.f32 %v841, %v845
          %v847 = vpack.c.bf16 %v846, %v846
          %v849 = vsel %vm835, %v847, 0
          %vm851 = vcmask 1043456
          %v853 = vsel %vm851, %v814, 0
          %855 = vmatpush.bf16.msra.mxu0 0
          %856 = vmatpush.bf16.msra.mxu0 0
          %857 = vmatpush.bf16.msra.mxu0 0
          %858 = vmatpush.bf16.msra.mxu0 0
          %859 = vmatpush.bf16.msra.mxu0 0
          %860 = vmatpush.bf16.msra.mxu0 0
          %861 = vmatpush.bf16.msra.mxu0 0
          %862 = vmatpush.bf16.msra.mxu0 %v853
          %863 = vmatmul.bf16.gmra.mxu0 %v849
          %v864 = vpop.f32.mrf.mxu0
          %v865 = vadd.f32 0.0, %v864
          %v866 = vpop.f32.mrf.mxu0
          %867 = vdwg.mxu0
          %v868 = vld [vmem:[#allocation5] sm:$0xff]
          %v869 = vpack.c.bf16 %v865, %v865
          %s870 = smul.u32 %s801, 2
          %s871 = smul.addr %s870, 4
          %s872 = scalar_lea.vmem %s6, %s871
          %v873 = vld [vmem:[%s872] sm:$0xf]
          %v874 = vld [vmem:[%s872 + $0x4] sm:$0xf]
          %v877 = vunpack.c.l.b16 %v873
          %v878 = vunpack.c.l.b16 %v874
          %v879 = vpack.c.b16 %v878, %v877
          %v882 = vsel %vm815, %v869, 0
          %884 = vmatpush.bf16.msra.mxu0 0
          %885 = vmatpush.bf16.msra.mxu0 0
          %886 = vmatpush.bf16.msra.mxu0 0
          %887 = vmatpush.bf16.msra.mxu0 0
          %888 = vmatpush.bf16.msra.mxu0 0
          %889 = vmatpush.bf16.msra.mxu0 0
          %890 = vmatpush.bf16.msra.mxu0 0
          %891 = vmatpush.bf16.msra.mxu0 %v879
          %892 = vmatmul.bf16.gmra.mxu0 %v882
          %v893 = vpop.f32.mrf.mxu0
          %v894 = vadd.f32 0.0, %v893
          %v895 = vpop.f32.mrf.mxu0
          %896 = vdwg.mxu0
          %v897 = vadd.f32 %v868, %v894
          %898 = vst.msk [vmem:[#allocation5] sm:$0xff] %vm707, %v897
        $region105: #{tpu_custom_call.1} parent=75 // loop_footer
          %s805 = sadd.s32 1, %s801
        $region106: #{tpu_custom_call.1} parent=75 // loop_footer_branch
          %800 = sbr.rel target = $region102
        $region107: #{tpu_custom_call.1} parent=75 // loop_exit
          _
        %v899 = vld [vmem:[#allocation5] sm:$0xff]
        %v900 = vadd.f32 %v706, %v899
        %v901 = vld [vmem:[%s7] sm:$0x1]
        %v903 = vperm.slane %v901, 0
        %v905 = vadd.f32 %v900, %v903
        %v906 = vsel %vm707, %v905, 0.0
        %907 = vadd.xlane.f32.xlu0 %v906
        %v908 = vpop.xlane.xlu0 %907
        %v909 = vmul.f32 %v908, %v717
        %v910 = vsub.f32 %v905, %v909
        %v911 = vmul.f32 %v910, %v910
        %v912 = vsel %vm707, %v911, 0.0
        %913 = vadd.xlane.f32.xlu0 %v912
        %v914 = vpop.xlane.xlu0 %913
        %v915 = vmul.f32 %v914, %v717
        %v916 = vadd.f32 %v915, 1e-05
        %v917 = vrsqrt.pop %v916
        %v918 = vmul.f32 %v917, %v916
        %v919 = vmul.f32 %v918, %v917
        %v920 = vmul.f32 0.5, %v919
        %v921 = vsub.f32 1.5, %v920
        %v922 = vmul.f32 %v917, %v921
        %vm923 = vweird.f32 %v916
        %vm924 = vweird.f32 %v917
        %vm925 = vmor %vm923, %vm924
        %v926 = vsel %vm925, %v917, %v922
        %v927 = vmul.f32 %v910, %v926
        %v928 = vld [vmem:[%s8] sm:$0x1]
        %v930 = vperm.slane %v928, 0
        %v932 = vmul.f32 %v927, %v930
        %v933 = vld [vmem:[%s9] sm:$0x1]
        %v935 = vperm.slane %v933, 0
        %v937 = vadd.f32 %v932, %v935
        %v938 = vpack.c.bf16 %v937, %v937
        %v939 = vld [vmem:[%s10] sm:$0xff]
        %v940 = vld [vmem:[%s10 + $0x8] sm:$0xff]
        %v941 = vld [vmem:[%s10 + $0x10] sm:$0xff]
        %v942 = vld [vmem:[%s10 + $0x18] sm:$0xff]
        %v943 = vld [vmem:[%s11] sm:$0x3]
        %v945 = vperm.slane %v943, 0
        %v946 = vperm.slane %v943, 1
        %v953 = vunpack.c.l.b16 %v939
        %v954 = vunpack.c.h.b16 %v939
        %v955 = vunpack.c.l.b16 %v940
        %v956 = vunpack.c.h.b16 %v940
        %v957 = vunpack.c.l.b16 %v941
        %v958 = vunpack.c.h.b16 %v941
        %v959 = vunpack.c.l.b16 %v942
        %v960 = vunpack.c.h.b16 %v942
        %v961 = vpack.c.b16 %v955, %v953
        %v962 = vpack.c.b16 %v956, %v954
        %v963 = vpack.c.b16 %v959, %v957
        %v964 = vpack.c.b16 %v960, %v958
        %v970 = vsel %vm707, %v938, 0
        %972 = vmatpush.bf16.msra.mxu0 0
        %973 = vmatpush.bf16.msra.mxu0 0
        %974 = vmatpush.bf16.msra.mxu0 0
        %975 = vmatpush.bf16.msra.mxu0 0
        %976 = vmatpush.bf16.msra.mxu0 0
        %977 = vmatpush.bf16.msra.mxu0 0
        %978 = vmatpush.bf16.msra.mxu0 %v963
        %979 = vmatpush.bf16.msra.mxu0 %v961
        %980 = vmatmul.bf16.gmra.mxu0 %v970
        %v981 = vpop.f32.mrf.mxu0
        %v982 = vadd.f32 %v945, %v981
        %v983 = vpop.f32.mrf.mxu0
        %984 = vdwg.mxu0
        %985 = vmatpush.bf16.msra.mxu0 0
        %986 = vmatpush.bf16.msra.mxu0 0
        %987 = vmatpush.bf16.msra.mxu0 0
        %988 = vmatpush.bf16.msra.mxu0 0
        %989 = vmatpush.bf16.msra.mxu0 0
        %990 = vmatpush.bf16.msra.mxu0 0
        %991 = vmatpush.bf16.msra.mxu0 %v964
        %992 = vmatpush.bf16.msra.mxu0 %v962
        %993 = vmatmul.bf16.gmra.mxu0 %v970
        %v994 = vpop.f32.mrf.mxu0
        %v995 = vadd.f32 %v946, %v994
        %v996 = vpop.f32.mrf.mxu0
        %997 = vdwg.mxu0
        %v998 = vmul.f32 %v995, 0.5
        %v999 = vmul.f32 %v995, 0.70710677
        %v1000 = vand.u32 2147483647, %v999
        %v1001 = vmul.f32 %v1000, 0.3275911
        %v1002 = vadd.f32 %v1001, 1.0
        %v1003 = vrcp.pop %v1002
        %v1004 = vmul.f32 %v1002, %v1003
        %v1005 = vsub.f32 1.0, %v1004
        %v1006 = vmul.f32 %v1003, %v1005
        %v1007 = vadd.f32 %v1003, %v1006
        %vm1008 = vweird.f32 %v1002
        %vm1009 = vweird.f32 %v1003
        %vm1010 = vmor %vm1008, %vm1009
        %v1011 = vsel %vm1010, %v1003, %v1007
        %v1012 = vand.u32 2147483647, %v1002
        %vm1013 = vcmp.eq.f32.partialorder %v1012, 8.507059e+37
        %v1014 = vand.u32 %v1002, 2147483648
        %v1015 = vor.u32 1.1754944e-38, %v1014
        %v1016 = vsel %vm1013, %v1015, %v1011
        %v1017 = vmul.f32 1.0, %v1016
        %v1018 = vmul.f32 %v1017, 1.0614054
        %v1019 = vadd.f32 %v1018, -1.4531521
        %v1020 = vmul.f32 %v1019, %v1017
        %v1021 = vadd.f32 %v1020, 1.4214138
        %v1022 = vmul.f32 %v1021, %v1017
        %v1023 = vadd.f32 %v1022, -0.28449672
        %v1024 = vmul.f32 %v1023, %v1017
        %v1025 = vadd.f32 %v1024, 0.2548296
        %v1026 = vmul.f32 %v1025, %v1017
        %v1027 = vsub.f32 0.0, %v1000
        %v1028 = vmul.f32 %v1027, %v1000
        %v1029 = vmul.f32 %v1028, 1.442695
        %v1030 = vpow.pop %v1029
        %v1031 = vmul.f32 %v1026, %v1030
        %v1032 = vsub.f32 1.0, %v1031
        %vm1033 = vcmp.ge.f32.partialorder %v999, 0.0
        %v1034 = vsub.f32 0.0, %v1032
        %v1035 = vsel %vm1033, %v1032, %v1034
        %v1036 = vadd.f32 %v1035, 1.0
        %v1037 = vmul.f32 %v998, %v1036
        %v1038 = vmul.f32 %v982, %v1037
        %v1039 = vpack.c.bf16 %v1038, %v1038
        %v1040 = vld [vmem:[%s12] sm:$0xf]
        %v1041 = vld [vmem:[%s12 + $0x4] sm:$0xf]
        %v1042 = vld [vmem:[%s12 + $0x8] sm:$0xf]
        %v1043 = vld [vmem:[%s12 + $0xc] sm:$0xf]
        %v1044 = vld [vmem:[%s12 + $0x10] sm:$0xf]
        %v1045 = vld [vmem:[%s12 + $0x14] sm:$0xf]
        %v1046 = vld [vmem:[%s12 + $0x18] sm:$0xf]
        %v1047 = vld [vmem:[%s12 + $0x1c] sm:$0xf]
        %v1048 = vld [vmem:[%s12 + $0x20] sm:$0xf]
        %v1049 = vld [vmem:[%s12 + $0x24] sm:$0xf]
        %v1050 = vld [vmem:[%s12 + $0x28] sm:$0xf]
        %v1051 = vld [vmem:[%s12 + $0x2c] sm:$0xf]
        %v1052 = vld [vmem:[%s12 + $0x30] sm:$0xf]
        %v1053 = vld [vmem:[%s12 + $0x34] sm:$0xf]
        %v1054 = vld [vmem:[%s12 + $0x38] sm:$0xf]
        %v1055 = vld [vmem:[%s12 + $0x3c] sm:$0xf]
        %v1056 = vld [vmem:[%s13] sm:$0x1]
        %v1058 = vperm.slane %v1056, 0
        %v1076 = vunpack.c.l.b16 %v1040
        %v1077 = vunpack.c.l.b16 %v1041
        %v1078 = vunpack.c.l.b16 %v1042
        %v1079 = vunpack.c.l.b16 %v1043
        %v1080 = vunpack.c.l.b16 %v1044
        %v1081 = vunpack.c.l.b16 %v1045
        %v1082 = vunpack.c.l.b16 %v1046
        %v1083 = vunpack.c.l.b16 %v1047
        %v1084 = vunpack.c.l.b16 %v1048
        %v1085 = vunpack.c.l.b16 %v1049
        %v1086 = vunpack.c.l.b16 %v1050
        %v1087 = vunpack.c.l.b16 %v1051
        %v1088 = vunpack.c.l.b16 %v1052
        %v1089 = vunpack.c.l.b16 %v1053
        %v1090 = vunpack.c.l.b16 %v1054
        %v1091 = vunpack.c.l.b16 %v1055
        %v1092 = vpack.c.b16 %v1077, %v1076
        %v1093 = vpack.c.b16 %v1079, %v1078
        %v1094 = vpack.c.b16 %v1081, %v1080
        %v1095 = vpack.c.b16 %v1083, %v1082
        %v1096 = vpack.c.b16 %v1085, %v1084
        %v1097 = vpack.c.b16 %v1087, %v1086
        %v1098 = vpack.c.b16 %v1089, %v1088
        %v1099 = vpack.c.b16 %v1091, %v1090
        %1108 = vmatpush.bf16.msra.mxu0 %v1099
        %1109 = vmatpush.bf16.msra.mxu0 %v1098
        %1110 = vmatpush.bf16.msra.mxu0 %v1097
        %1111 = vmatpush.bf16.msra.mxu0 %v1096
        %1112 = vmatpush.bf16.msra.mxu0 %v1095
        %1113 = vmatpush.bf16.msra.mxu0 %v1094
        %1114 = vmatpush.bf16.msra.mxu0 %v1093
        %1115 = vmatpush.bf16.msra.mxu0 %v1092
        %1116 = vmatmul.bf16.gmra.mxu0 %v1039
        %v1117 = vpop.f32.mrf.mxu0
        %v1118 = vadd.f32 %v1058, %v1117
        %v1119 = vpop.f32.mrf.mxu0
        %1120 = vdwg.mxu0
        %v1121 = vadd.f32 %v905, %v1118
        %1122 = vst.msk [vmem:[%s581] sm:$0xff] %vm707, %v1121
        %s1123 = sand.u32 %s361, 1
        %s1124 = scalar_lea.sflag [#allocation8], %s1123
        %s1125 = sand.u32 %s361, 1
        %s1126 = smul.addr %s1125, 8
        %s1127 = scalar_lea.vmem [#allocation15], %s1126
        // Predicated region
        $region108: #{tpu_custom_call.1} parent=75 // pred_check
          %p1128 = pneg %p371
        $region109: #{tpu_custom_call.1} parent=75 // pred_check_branch
          %1130 = sbr.rel (%p1128) target = $region111
        $region110: #{tpu_custom_call.1} parent=75 // pred_region
          %1132 = vsyncadd %s1124, 0
          %s1133 = sadd.s32 %s38, %s37
          %s1134 = smul.addr %s1133, 8
          %s1135 = scalar_lea.hbm %s14, %s1134
          %s1137 = sshll.u32 %s1127, 4
          %s1138 = int_to_ptr.vmem [resolvable:$true] %s1137
          %s1139 = sshll.u32 %s1135, 4
          %s1140 = int_to_ptr.hbm [resolvable:$true] %s1139
          %1142 = dma.vmem_to_hbm [thread:$0]  %s1138, 128, %s1140, %s1124
        $region111: #{tpu_custom_call.1} parent=75 // pred_fallthru
          _
      $region76: #{tpu_custom_call.1} parent=5 // pred_fallthru
        _
      %p1143 = scmp.le.s32.totalorder 2, %s28
      // Predicated region
      $region112: #{tpu_custom_call.1} parent=5 // pred_check
        %p1144 = pneg %p1143
      $region113: #{tpu_custom_call.1} parent=5 // pred_check_branch
        %1146 = sbr.rel (%p1144) target = $region115
      $region114: #{tpu_custom_call.1} parent=5 // pred_region
        %s1147 = ssub.s32 %s28, 2
        // Predicated region
        $region116: #{tpu_custom_call.1} parent=114 // pred_check
          %p1148 = pneg %p377
        $region117: #{tpu_custom_call.1} parent=114 // pred_check_branch
          %1150 = sbr.rel (%p1148) target = $region119
        $region118: #{tpu_custom_call.1} parent=114 // pred_region
          %s1151 = sand.u32 %s362, 1
          %s1152 = scalar_lea.sflag [#allocation8], %s1151
          %s1153 = sand.u32 %s362, 1
          %s1154 = smul.addr %s1153, 8
          %s1155 = scalar_lea.vmem [#allocation15], %s1154
          %1157 = dma.done %s1152, 128
        $region119: #{tpu_custom_call.1} parent=114 // pred_fallthru
          _
      $region115: #{tpu_custom_call.1} parent=5 // pred_fallthru
        _
    $region6: #{tpu_custom_call.1} parent=1 // loop_footer
      %s32 = sadd.s32 1, %s28
    $region7: #{tpu_custom_call.1} parent=1 // loop_footer_branch
      %27 = sbr.rel target = $region3
    $region8: #{tpu_custom_call.1} parent=1 // loop_exit
      _
    %1158 = vsyncpa [#allocation7], 1
    %s1159 = scalar_lea.sflag [#allocation7], 1
    %1160 = vsyncpa %s1159, 1
    %1161 = vsyncpa [#allocation10], 1
    %1162 = vsyncpa [#allocation13], 1
    %1163 = vsyncpa [#allocation8], 1
    %s1164 = scalar_lea.sflag [#allocation8], 1
    %1165 = vsyncpa %s1164, 1

</llo_original>
